<compile_context>
chip_gen: v5e
topology: v5e:2x2
jax: 0.10.0
libtpu: 0.0.40
codegen_flags: <defaults>
</compile_context>

<pallas_src>
import jax
import jax.numpy as jnp
from jax.experimental import pallas as pl
from jax.experimental.pallas import tpu as pltpu


def _round_up(n, m):
    return (n + m - 1) // m * m


def _cdiv(a, b):
    return -(-a // b)


# true layer sizes of PolicyNet
DIMS = [100, 300, 200, 100, 50, 1]
# lane-aligned (padded) sizes
PDIMS = [_round_up(d, 128) for d in DIMS]  # [128, 384, 256, 128, 128, 128]

# Max batch tile (M dim of every matmul). 1024 keeps the largest live intermediate
# ((TB,384) f32 ~1.5 MiB) + resident weights well under v5e's 16 MiB scoped default.
BLOCK_B = 1024


def policy_net_kernel(x_ref,
                      w1_ref, b1_ref,
                      w2_ref, b2_ref,
                      w3_ref, b3_ref,
                      w4_ref, b4_ref,
                      w5_ref, b5_ref,
                      o_ref):
    """One batch tile of the whole MLP: 4x (matmul + bias + ReLU), tiny matvec + tanh."""

    def dense_relu(h, w_ref, b_ref):
        # bias add + ReLU in f32 (v5e has no bf16 VALU), then cast for the next matmul.
        z = jnp.dot(h, w_ref[...], preferred_element_type=jnp.float32) + b_ref[...]
        return jnp.maximum(z, 0.0).astype(jnp.bfloat16)

    h = x_ref[...]                       # (TB, 128) bf16
    h = dense_relu(h, w1_ref, b1_ref)    # (TB, 384)
    h = dense_relu(h, w2_ref, b2_ref)    # (TB, 256)
    h = dense_relu(h, w3_ref, b3_ref)    # (TB, 128)
    h = dense_relu(h, w4_ref, b4_ref)    # (TB, 128), lanes >= 50 are zero

    # Final (50 -> 1) layer: w5 is an (8, 128) row block (only row 0 real), so
    # z5 = w5 @ h^T is a tiny M=8 matmul whose result is already lane-dense.
    # This removes the padded 128-wide layer-5 matmul (~8% of MXU work) and the
    # (TB, 128) f32 transpose that previously sat on the critical tail.
    z5 = jax.lax.dot_general(
        w5_ref[...], h, (((1,), (1,)), ((), ())),
        preferred_element_type=jnp.float32)               # (8, TB) f32
    row = z5[0:1, :] + b5_ref[0:1, 0:1]                   # (1, TB) f32
    o_ref[...] = jnp.tanh(row).astype(o_ref.dtype)        # lane-dense (1, TB) store


def _pad2d(a, rows, cols):
    return jnp.pad(a, ((0, rows - a.shape[0]), (0, cols - a.shape[1])))


def prepare_params(params):
    """One-time weight prep (hoisted out of the forward pass).

    Layers 1-4: PyTorch (out, in) -> padded (in, out) bf16; biases -> padded (1, out) f32.
    Layer 5: kept as an (out, in) row, padded to (8, 128) bf16 (row 0 real) so the kernel
    can contract it against h with no transposes; bias padded to (1, 128) f32 ([0,0] real).
    """
    prepared = []
    n = len(params)
    for i, (w, b) in enumerate(params):
        w = jnp.asarray(w, jnp.float32)
        b = jnp.asarray(b, jnp.float32)
        if i < n - 1:
            w_io = jnp.transpose(w)                                        # (in, out)
            w_p = _pad2d(w_io, PDIMS[i], PDIMS[i + 1]).astype(jnp.bfloat16)
        else:
            w_p = _pad2d(w, 8, PDIMS[i]).astype(jnp.bfloat16)              # (8, 128)
        b_p = _pad2d(b.reshape(1, -1), 1, PDIMS[i + 1])                    # f32
        prepared.append((w_p, b_p))
    return tuple(prepared)


@jax.jit
def policy_net_forward(x, prepared):
    """x: (B, 100) float32. prepared: output of prepare_params(). Returns (B, 1) float32."""
    B = x.shape[0]
    Bp128 = _round_up(max(B, 1), 128)

    # Adaptive batch tile: small batches pad only to 128, medium batches get >= 2 grid
    # steps (both v7x TensorCores run), large batches use BLOCK_B tiles.
    nsteps = _cdiv(Bp128, BLOCK_B)
    if nsteps == 1 and Bp128 % 256 == 0:
        nsteps = 2
    TB = _round_up(_cdiv(Bp128, nsteps), 128)
    Bp = _round_up(Bp128, TB)
    grid = Bp // TB

    x_p = _pad2d(x, Bp, PDIMS[0]).astype(jnp.bfloat16)

    flat_args = [x_p]
    for w_p, b_p in prepared:
        flat_args.extend([w_p, b_p])

    # x streams through VMEM (default double-buffering is enough: the tile DMA is far
    # smaller than per-tile compute). Weights/biases: constant index_map -> resident.
    in_specs = [pl.BlockSpec((TB, PDIMS[0]), lambda i: (i, 0))]
    for li in range(len(DIMS) - 2):
        in_specs.append(pl.BlockSpec((PDIMS[li], PDIMS[li + 1]), lambda i: (0, 0)))
        in_specs.append(pl.BlockSpec((1, PDIMS[li + 1]), lambda i: (0, 0)))
    in_specs.append(pl.BlockSpec((8, PDIMS[-2]), lambda i: (0, 0)))        # w5 row block
    in_specs.append(pl.BlockSpec((1, PDIMS[-1]), lambda i: (0, 0)))        # b5

    flops = 2 * Bp * sum(PDIMS[i] * PDIMS[i + 1] for i in range(len(DIMS) - 2))
    flops += 2 * Bp * 8 * PDIMS[-2]
    bytes_accessed = (int(x_p.size) * 2 + Bp * 4
                      + sum(int(w.size) * 2 + int(b.size) * 4 for w, b in prepared))

    out_p = pl.pallas_call(
        policy_net_kernel,
        out_shape=jax.ShapeDtypeStruct((1, Bp), jnp.float32),
        grid=(grid,),
        in_specs=in_specs,
        out_specs=pl.BlockSpec((1, TB), lambda i: (0, i)),
        compiler_params=pltpu.CompilerParams(
            dimension_semantics=("parallel",),
            vmem_limit_bytes=32 * 1024 * 1024),
        cost_estimate=pl.CostEstimate(flops=flops, transcendentals=Bp,
                                      bytes_accessed=bytes_accessed),
    )(*flat_args)

    return out_p[0, :B].reshape(B, 1)


def init_params(key):
    """Deterministic PyTorch-style init: U(-1/sqrt(fan_in), 1/sqrt(fan_in))."""
    params = []
    for i in range(len(DIMS) - 1):
        fan_in, fan_out = DIMS[i], DIMS[i + 1]
        key, kw, kb = jax.random.split(key, 3)
        bound = 1.0 / (fan_in ** 0.5)
        w = jax.random.uniform(kw, (fan_out, fan_in), jnp.float32, -bound, bound)
        b = jax.random.uniform(kb, (fan_out,), jnp.float32, -bound, bound)
        params.append((w, b))
    return params


def reference_forward(x, params):
    h = x
    for i, (w, b) in enumerate(params):
        h = h @ w.T + b
        if i < len(params) - 1:
            h = jnp.maximum(h, 0.0)
        else:
            h = jnp.tanh(h)
    return h


if __name__ == "__main__":
    key = jax.random.PRNGKey(0)
    kx, kp = jax.random.split(key)

    batch = 8
    x = jax.random.normal(kx, (batch, 100), jnp.float32)
    params = init_params(kp)

    prepared = prepare_params(params)          # hoisted one-time weight prep
    out = policy_net_forward(x, prepared)
    out = jax.block_until_ready(out)

    ref = reference_forward(x, params)         # f32 reference
    assert out.shape == (batch, 1)
    # bf16 weights/activations (f32 accumulation): relaxed tolerance vs. f32 reference.
    assert jnp.allclose(out, ref, atol=2e-2, rtol=2e-2), (
        f"max abs err {jnp.max(jnp.abs(out - ref))}")

    print("KERNEL_OK")
</pallas_src>

<mosaic_0001>
module attributes {stable_mosaic.version = 11 : i64} {
  func.func @policy_net_kernel(%arg0: i32, %arg1: memref<128x128xbf16, #tpu.memory_space<vmem>>, %arg2: memref<128x384xbf16, #tpu.memory_space<vmem>>, %arg3: memref<1x384xf32, #tpu.memory_space<vmem>>, %arg4: memref<384x256xbf16, #tpu.memory_space<vmem>>, %arg5: memref<1x256xf32, #tpu.memory_space<vmem>>, %arg6: memref<256x128xbf16, #tpu.memory_space<vmem>>, %arg7: memref<1x128xf32, #tpu.memory_space<vmem>>, %arg8: memref<128x128xbf16, #tpu.memory_space<vmem>>, %arg9: memref<1x128xf32, #tpu.memory_space<vmem>>, %arg10: memref<8x128xbf16, #tpu.memory_space<vmem>>, %arg11: memref<1x128xf32, #tpu.memory_space<vmem>>, %arg12: memref<1x128xf32, #tpu.memory_space<vmem>>) attributes {dimension_semantics = [#tpu.dimension_semantics<parallel>], iteration_bounds = array<i64: 1>, scalar_prefetch = 0 : i64, scratch_operands = 0 : i64, tpu.core_type = #tpu.core_type<tc>, window_params = [{transform_indices = @transform_0, window_bounds = array<i64: 128, 128>}, {pipeline_mode = #tpu.pipeline_mode<synchronous>, transform_indices = @transform_1, window_bounds = array<i64: 128, 384>}, {pipeline_mode = #tpu.pipeline_mode<synchronous>, transform_indices = @transform_2, window_bounds = array<i64: 1, 384>}, {pipeline_mode = #tpu.pipeline_mode<synchronous>, transform_indices = @transform_3, window_bounds = array<i64: 384, 256>}, {pipeline_mode = #tpu.pipeline_mode<synchronous>, transform_indices = @transform_4, window_bounds = array<i64: 1, 256>}, {pipeline_mode = #tpu.pipeline_mode<synchronous>, transform_indices = @transform_5, window_bounds = array<i64: 256, 128>}, {pipeline_mode = #tpu.pipeline_mode<synchronous>, transform_indices = @transform_6, window_bounds = array<i64: 1, 128>}, {pipeline_mode = #tpu.pipeline_mode<synchronous>, transform_indices = @transform_7, window_bounds = array<i64: 128, 128>}, {pipeline_mode = #tpu.pipeline_mode<synchronous>, transform_indices = @transform_8, window_bounds = array<i64: 1, 128>}, {pipeline_mode = #tpu.pipeline_mode<synchronous>, transform_indices = @transform_9, window_bounds = array<i64: 8, 128>}, {pipeline_mode = #tpu.pipeline_mode<synchronous>, transform_indices = @transform_10, window_bounds = array<i64: 1, 128>}, {transform_indices = @transform_11, window_bounds = array<i64: 1, 128>}]} {
    %c0 = arith.constant 0 : index
    %c0_0 = arith.constant 0 : index
    %0 = vector.load %arg1[%c0, %c0_0] : memref<128x128xbf16, #tpu.memory_space<vmem>>, vector<128x128xbf16>
    %c0_1 = arith.constant 0 : index
    %c0_2 = arith.constant 0 : index
    %1 = vector.load %arg2[%c0_1, %c0_2] : memref<128x384xbf16, #tpu.memory_space<vmem>>, vector<128x384xbf16>
    %cst = arith.constant dense<0.000000e+00> : vector<128x384xf32>
    %2 = tpu.matmul %0, %1, %cst {dimension_numbers = #tpu.dot_dimension_numbers<[1], [0], [0], [1], [0, 0, 1, 1], [], []>} : vector<128x128xbf16>, vector<128x384xbf16>, vector<128x384xf32> -> vector<128x384xf32>
    %c0_3 = arith.constant 0 : index
    %c0_4 = arith.constant 0 : index
    %3 = vector.load %arg3[%c0_3, %c0_4] : memref<1x384xf32, #tpu.memory_space<vmem>>, vector<1x384xf32>
    %4 = vector.broadcast %3 : vector<1x384xf32> to vector<128x384xf32>
    %5 = arith.addf %2, %4 : vector<128x384xf32>
    %cst_5 = arith.constant 0.000000e+00 : f32
    %6 = vector.broadcast %cst_5 : f32 to vector<128x384xf32>
    %7 = arith.maximumf %5, %6 : vector<128x384xf32>
    %8 = arith.truncf %7 : vector<128x384xf32> to vector<128x384xbf16>
    %c0_6 = arith.constant 0 : index
    %c0_7 = arith.constant 0 : index
    %9 = vector.load %arg4[%c0_6, %c0_7] : memref<384x256xbf16, #tpu.memory_space<vmem>>, vector<384x256xbf16>
    %cst_8 = arith.constant dense<0.000000e+00> : vector<128x256xf32>
    %10 = tpu.matmul %8, %9, %cst_8 {dimension_numbers = #tpu.dot_dimension_numbers<[1], [0], [0], [1], [0, 0, 1, 1], [], []>} : vector<128x384xbf16>, vector<384x256xbf16>, vector<128x256xf32> -> vector<128x256xf32>
    %c0_9 = arith.constant 0 : index
    %c0_10 = arith.constant 0 : index
    %11 = vector.load %arg5[%c0_9, %c0_10] : memref<1x256xf32, #tpu.memory_space<vmem>>, vector<1x256xf32>
    %12 = vector.broadcast %11 : vector<1x256xf32> to vector<128x256xf32>
    %13 = arith.addf %10, %12 : vector<128x256xf32>
    %cst_11 = arith.constant 0.000000e+00 : f32
    %14 = vector.broadcast %cst_11 : f32 to vector<128x256xf32>
    %15 = arith.maximumf %13, %14 : vector<128x256xf32>
    %16 = arith.truncf %15 : vector<128x256xf32> to vector<128x256xbf16>
    %c0_12 = arith.constant 0 : index
    %c0_13 = arith.constant 0 : index
    %17 = vector.load %arg6[%c0_12, %c0_13] : memref<256x128xbf16, #tpu.memory_space<vmem>>, vector<256x128xbf16>
    %cst_14 = arith.constant dense<0.000000e+00> : vector<128x128xf32>
    %18 = tpu.matmul %16, %17, %cst_14 {dimension_numbers = #tpu.dot_dimension_numbers<[1], [0], [0], [1], [0, 0, 1, 1], [], []>} : vector<128x256xbf16>, vector<256x128xbf16>, vector<128x128xf32> -> vector<128x128xf32>
    %c0_15 = arith.constant 0 : index
    %c0_16 = arith.constant 0 : index
    %19 = vector.load %arg7[%c0_15, %c0_16] : memref<1x128xf32, #tpu.memory_space<vmem>>, vector<1x128xf32>
    %20 = vector.broadcast %19 : vector<1x128xf32> to vector<128x128xf32>
    %21 = arith.addf %18, %20 : vector<128x128xf32>
    %cst_17 = arith.constant 0.000000e+00 : f32
    %22 = vector.broadcast %cst_17 : f32 to vector<128x128xf32>
    %23 = arith.maximumf %21, %22 : vector<128x128xf32>
    %24 = arith.truncf %23 : vector<128x128xf32> to vector<128x128xbf16>
    %c0_18 = arith.constant 0 : index
    %c0_19 = arith.constant 0 : index
    %25 = vector.load %arg8[%c0_18, %c0_19] : memref<128x128xbf16, #tpu.memory_space<vmem>>, vector<128x128xbf16>
    %cst_20 = arith.constant dense<0.000000e+00> : vector<128x128xf32>
    %26 = tpu.matmul %24, %25, %cst_20 {dimension_numbers = #tpu.dot_dimension_numbers<[1], [0], [0], [1], [0, 0, 1, 1], [], []>} : vector<128x128xbf16>, vector<128x128xbf16>, vector<128x128xf32> -> vector<128x128xf32>
    %c0_21 = arith.constant 0 : index
    %c0_22 = arith.constant 0 : index
    %27 = vector.load %arg9[%c0_21, %c0_22] : memref<1x128xf32, #tpu.memory_space<vmem>>, vector<1x128xf32>
    %28 = vector.broadcast %27 : vector<1x128xf32> to vector<128x128xf32>
    %29 = arith.addf %26, %28 : vector<128x128xf32>
    %cst_23 = arith.constant 0.000000e+00 : f32
    %30 = vector.broadcast %cst_23 : f32 to vector<128x128xf32>
    %31 = arith.maximumf %29, %30 : vector<128x128xf32>
    %32 = arith.truncf %31 : vector<128x128xf32> to vector<128x128xbf16>
    %c0_24 = arith.constant 0 : index
    %c0_25 = arith.constant 0 : index
    %33 = vector.load %arg10[%c0_24, %c0_25] : memref<8x128xbf16, #tpu.memory_space<vmem>>, vector<8x128xbf16>
    %cst_26 = arith.constant dense<0.000000e+00> : vector<8x128xf32>
    %34 = tpu.matmul %33, %32, %cst_26 {dimension_numbers = #tpu.dot_dimension_numbers<[1], [1], [0], [0], [0, 0, 1, 0], [], []>} : vector<8x128xbf16>, vector<128x128xbf16>, vector<8x128xf32> -> vector<8x128xf32>
    %35 = vector.extract_strided_slice %34 {offsets = [0, 0], sizes = [1, 128], strides = [1, 1]} : vector<8x128xf32> to vector<1x128xf32>
    %c0_27 = arith.constant 0 : index
    %c0_28 = arith.constant 0 : index
    %36 = vector.load %arg11[%c0_27, %c0_28] : memref<1x128xf32, #tpu.memory_space<vmem>>, vector<1x1xf32>
    %37 = vector.broadcast %36 : vector<1x1xf32> to vector<1x128xf32>
    %38 = arith.addf %35, %37 : vector<1x128xf32>
    %39 = math.tanh %38 : vector<1x128xf32>
    %c0_29 = arith.constant 0 : index
    %c0_30 = arith.constant 0 : index
    %40 = vector.load %arg12[%c0_29, %c0_30] : memref<1x128xf32, #tpu.memory_space<vmem>>, vector<1x128xf32>
    tpu.vector_store %arg12[%c0_29, %c0_30], %39 {strides = array<i32>} : memref<1x128xf32, #tpu.memory_space<vmem>>, vector<1x128xf32>,
    return
  }
  func.func @transform_0(%arg0: i32) -> (i32, i32) {
    %c0_i32 = arith.constant 0 : i32
    %c0_i32_0 = arith.constant 0 : i32
    return %arg0, %c0_i32 : i32, i32
  }
  func.func @transform_1(%arg0: i32) -> (i32, i32) {
    %c0_i32 = arith.constant 0 : i32
    %c0_i32_0 = arith.constant 0 : i32
    %c0_i32_1 = arith.constant 0 : i32
    return %c0_i32, %c0_i32_0 : i32, i32
  }
  func.func @transform_2(%arg0: i32) -> (i32, i32) {
    %c0_i32 = arith.constant 0 : i32
    %c0_i32_0 = arith.constant 0 : i32
    %c0_i32_1 = arith.constant 0 : i32
    return %c0_i32, %c0_i32_0 : i32, i32
  }
  func.func @transform_3(%arg0: i32) -> (i32, i32) {
    %c0_i32 = arith.constant 0 : i32
    %c0_i32_0 = arith.constant 0 : i32
    %c0_i32_1 = arith.constant 0 : i32
    return %c0_i32, %c0_i32_0 : i32, i32
  }
  func.func @transform_4(%arg0: i32) -> (i32, i32) {
    %c0_i32 = arith.constant 0 : i32
    %c0_i32_0 = arith.constant 0 : i32
    %c0_i32_1 = arith.constant 0 : i32
    return %c0_i32, %c0_i32_0 : i32, i32
  }
  func.func @transform_5(%arg0: i32) -> (i32, i32) {
    %c0_i32 = arith.constant 0 : i32
    %c0_i32_0 = arith.constant 0 : i32
    %c0_i32_1 = arith.constant 0 : i32
    return %c0_i32, %c0_i32_0 : i32, i32
  }
  func.func @transform_6(%arg0: i32) -> (i32, i32) {
    %c0_i32 = arith.constant 0 : i32
    %c0_i32_0 = arith.constant 0 : i32
    %c0_i32_1 = arith.constant 0 : i32
    return %c0_i32, %c0_i32_0 : i32, i32
  }
  func.func @transform_7(%arg0: i32) -> (i32, i32) {
    %c0_i32 = arith.constant 0 : i32
    %c0_i32_0 = arith.constant 0 : i32
    %c0_i32_1 = arith.constant 0 : i32
    return %c0_i32, %c0_i32_0 : i32, i32
  }
  func.func @transform_8(%arg0: i32) -> (i32, i32) {
    %c0_i32 = arith.constant 0 : i32
    %c0_i32_0 = arith.constant 0 : i32
    %c0_i32_1 = arith.constant 0 : i32
    return %c0_i32, %c0_i32_0 : i32, i32
  }
  func.func @transform_9(%arg0: i32) -> (i32, i32) {
    %c0_i32 = arith.constant 0 : i32
    %c0_i32_0 = arith.constant 0 : i32
    %c0_i32_1 = arith.constant 0 : i32
    return %c0_i32, %c0_i32_0 : i32, i32
  }
  func.func @transform_10(%arg0: i32) -> (i32, i32) {
    %c0_i32 = arith.constant 0 : i32
    %c0_i32_0 = arith.constant 0 : i32
    %c0_i32_1 = arith.constant 0 : i32
    return %c0_i32, %c0_i32_0 : i32, i32
  }
  func.func @transform_11(%arg0: i32) -> (i32, i32) {
    %c0_i32 = arith.constant 0 : i32
    %c0_i32_0 = arith.constant 0 : i32
    return %c0_i32, %arg0 : i32, i32
  }
}

</mosaic_0001>

<llo_original>
// kernel: policy_net_forward.1
$region0: #{policy_net_forward.1}
  #allocation0 [shape = 'u32[]', space=smem, size = 0x4, offset = 0x4, fixed_abs, tag = 'smem constant byte address 0x4 - core index']
  #allocation1 [shape = 'u32[72,128]{1,0:T(1,128)}', space=vmem, size = 0x9000, scoped, tag = 'internal scratch']
  %s0 = inlined_call_operand.vmem [shape: bf16[128,128], index: 0, kind: input, shape index: {}]
  %s1 = inlined_call_operand.hbm [shape: bf16[128,384], index: 1, kind: input, shape index: {}]
  %s2 = inlined_call_operand.vmem [shape: f32[1,384], index: 2, kind: input, shape index: {}]
  %s3 = inlined_call_operand.hbm [shape: bf16[384,256], index: 3, kind: input, shape index: {}]
  %s4 = inlined_call_operand.vmem [shape: f32[1,256], index: 4, kind: input, shape index: {}]
  %s5 = inlined_call_operand.hbm [shape: bf16[256,128], index: 5, kind: input, shape index: {}]
  %s6 = inlined_call_operand.vmem [shape: f32[1,128], index: 6, kind: input, shape index: {}]
  %s7 = inlined_call_operand.vmem [shape: bf16[128,128], index: 7, kind: input, shape index: {}]
  %s8 = inlined_call_operand.vmem [shape: f32[1,128], index: 8, kind: input, shape index: {}]
  %s9 = inlined_call_operand.vmem [shape: bf16[8,128], index: 9, kind: input, shape index: {}]
  %s10 = inlined_call_operand.vmem [shape: f32[1,128], index: 10, kind: input, shape index: {}]
  %s11 = inlined_call_operand.vmem [shape: f32[1,128], index: 11, kind: output, shape index: {}]
  %s12 = sld [smem:[#allocation0]]
  $region66: #{policy_net_forward.1} parent=0
    _
  %s14 = ssub.s32 1, %s12
  %s15 = scalar_select 0, %s14, %s12
  $region1: #{policy_net_forward.1} parent=0
    #allocation2 [shape = 'u8[98304]{0}', space=vmem, size = 0x18000, scoped, tag = 'input window, operand 1, single buffered']
    #allocation3 [shape = 's32[1]{0}', space=sflag, size = 0x4, scoped, tag = 'scoped memory for policy_net_forward.1']
    #allocation4 [shape = 'u8[196608]{0}', space=vmem, size = 0x30000, scoped, tag = 'input window, operand 3, single buffered']
    #allocation5 [shape = 's32[1]{0}', space=sflag, size = 0x4, scoped, tag = 'scoped memory for policy_net_forward.1']
    #allocation6 [shape = 'u8[65536]{0}', space=vmem, size = 0x10000, scoped, tag = 'input window, operand 5, single buffered']
    %16 = vsyncpa [#allocation3], 0
    %17 = vsyncpa [#allocation5], 0
    // Predicated region
    $region2: #{policy_net_forward.1} parent=1 // pred_check
      _
    $region3: #{policy_net_forward.1} parent=1 // pred_check_branch
      %19 = sbr.rel (0) target = $region5
    $region4: #{policy_net_forward.1} parent=1 // pred_region
      _
    $region5: #{policy_net_forward.1} parent=1 // pred_fallthru
      _
    // Predicated region
    $region6: #{policy_net_forward.1} parent=1 // pred_check
      _
    $region7: #{policy_net_forward.1} parent=1 // pred_check_branch
      %21 = sbr.rel (0) target = $region9
    $region8: #{policy_net_forward.1} parent=1 // pred_region
      %23 = vsyncadd [#allocation3], 0
      %s24 = sshll.u32 %s1, 4
      %s25 = int_to_ptr.hbm [resolvable:$true] %s24
      %s26 = sshll.u32 [#allocation2], 4
      %s27 = int_to_ptr.vmem [resolvable:$true] %s26
      %32 = dma.hbm_to_vmem [thread:$0]  %s25, 3072, %s27, [#allocation3], 192, 192, 12
    $region9: #{policy_net_forward.1} parent=1 // pred_fallthru
      _
    // Predicated region
    $region10: #{policy_net_forward.1} parent=1 // pred_check
      _
    $region11: #{policy_net_forward.1} parent=1 // pred_check_branch
      %34 = sbr.rel (0) target = $region13
    $region12: #{policy_net_forward.1} parent=1 // pred_region
      _
    $region13: #{policy_net_forward.1} parent=1 // pred_fallthru
      _
    // Predicated region
    $region14: #{policy_net_forward.1} parent=1 // pred_check
      _
    $region15: #{policy_net_forward.1} parent=1 // pred_check_branch
      %36 = sbr.rel (0) target = $region17
    $region16: #{policy_net_forward.1} parent=1 // pred_region
      %38 = vsyncadd [#allocation5], 0
      %s39 = sshll.u32 %s3, 4
      %s40 = int_to_ptr.hbm [resolvable:$true] %s39
      %s41 = sshll.u32 [#allocation4], 4
      %s42 = int_to_ptr.vmem [resolvable:$true] %s41
      %47 = dma.hbm_to_vmem [thread:$0]  %s40, 6144, %s42, [#allocation5], 128, 128, 8
    $region17: #{policy_net_forward.1} parent=1 // pred_fallthru
      _
    // Predicated region
    $region18: #{policy_net_forward.1} parent=1 // pred_check
      _
    $region19: #{policy_net_forward.1} parent=1 // pred_check_branch
      %49 = sbr.rel (0) target = $region21
    $region20: #{policy_net_forward.1} parent=1 // pred_region
      _
    $region21: #{policy_net_forward.1} parent=1 // pred_fallthru
      _
    // Predicated region
    $region22: #{policy_net_forward.1} parent=1 // pred_check
      _
    $region23: #{policy_net_forward.1} parent=1 // pred_check_branch
      %51 = sbr.rel (0) target = $region25
    $region24: #{policy_net_forward.1} parent=1 // pred_region
      %53 = vsyncadd [#allocation5], 0
      %s54 = sshll.u32 %s5, 4
      %s55 = int_to_ptr.hbm [resolvable:$true] %s54
      %s56 = sshll.u32 [#allocation6], 4
      %s57 = int_to_ptr.vmem [resolvable:$true] %s56
      %62 = dma.hbm_to_vmem [thread:$0]  %s55, 2048, %s57, [#allocation5], 64, 64, 4
    $region25: #{policy_net_forward.1} parent=1 // pred_fallthru
      _
    // Predicated region
    $region26: #{policy_net_forward.1} parent=1 // pred_check
      _
    $region27: #{policy_net_forward.1} parent=1 // pred_check_branch
      %64 = sbr.rel (0) target = $region29
    $region28: #{policy_net_forward.1} parent=1 // pred_region
      _
    $region29: #{policy_net_forward.1} parent=1 // pred_fallthru
      _
    // Predicated region
    $region30: #{policy_net_forward.1} parent=1 // pred_check
      _
    $region31: #{policy_net_forward.1} parent=1 // pred_check_branch
      %66 = sbr.rel (0) target = $region33
    $region32: #{policy_net_forward.1} parent=1 // pred_region
      _
    $region33: #{policy_net_forward.1} parent=1 // pred_fallthru
      _
    // Predicated region
    $region34: #{policy_net_forward.1} parent=1 // pred_check
      _
    $region35: #{policy_net_forward.1} parent=1 // pred_check_branch
      %68 = sbr.rel (0) target = $region37
    $region36: #{policy_net_forward.1} parent=1 // pred_region
      _
    $region37: #{policy_net_forward.1} parent=1 // pred_fallthru
      _
    // Predicated region
    $region38: #{policy_net_forward.1} parent=1 // pred_check
      _
    $region39: #{policy_net_forward.1} parent=1 // pred_check_branch
      %70 = sbr.rel (0) target = $region41
    $region40: #{policy_net_forward.1} parent=1 // pred_region
      _
    $region41: #{policy_net_forward.1} parent=1 // pred_fallthru
      _
    // Predicated region
    $region42: #{policy_net_forward.1} parent=1 // pred_check
      _
    $region43: #{policy_net_forward.1} parent=1 // pred_check_branch
      %72 = sbr.rel (0) target = $region45
    $region44: #{policy_net_forward.1} parent=1 // pred_region
      _
    $region45: #{policy_net_forward.1} parent=1 // pred_fallthru
      _
    // Predicated region
    $region46: #{policy_net_forward.1} parent=1 // pred_check
      _
    $region47: #{policy_net_forward.1} parent=1 // pred_check_branch
      %74 = sbr.rel (0) target = $region49
    $region48: #{policy_net_forward.1} parent=1 // pred_region
      %76 = dma.done [#allocation3], 3072
    $region49: #{policy_net_forward.1} parent=1 // pred_fallthru
      _
    // Predicated region
    $region50: #{policy_net_forward.1} parent=1 // pred_check
      _
    $region51: #{policy_net_forward.1} parent=1 // pred_check_branch
      %78 = sbr.rel (0) target = $region53
    $region52: #{policy_net_forward.1} parent=1 // pred_region
      %80 = dma.done [#allocation5], 6144
    $region53: #{policy_net_forward.1} parent=1 // pred_fallthru
      _
    // Predicated region
    $region54: #{policy_net_forward.1} parent=1 // pred_check
      _
    $region55: #{policy_net_forward.1} parent=1 // pred_check_branch
      %82 = sbr.rel (0) target = $region57
    $region56: #{policy_net_forward.1} parent=1 // pred_region
      %84 = dma.done [#allocation5], 2048
    $region57: #{policy_net_forward.1} parent=1 // pred_fallthru
      _
    %v85 = vld [vmem:[%s0] sm:$0xf]
    %v86 = vld [vmem:[%s0 + $0x4] sm:$0xf]
    %v87 = vld [vmem:[%s0 + $0x8] sm:$0xf]
    %v88 = vld [vmem:[%s0 + $0xc] sm:$0xf]
    %v89 = vld [vmem:[%s0 + $0x10] sm:$0xf]
    %v90 = vld [vmem:[%s0 + $0x14] sm:$0xf]
    %v91 = vld [vmem:[%s0 + $0x18] sm:$0xf]
    %v92 = vld [vmem:[%s0 + $0x1c] sm:$0xf]
    %v93 = vld [vmem:[%s0 + $0x20] sm:$0xf]
    %v94 = vld [vmem:[%s0 + $0x24] sm:$0xf]
    %v95 = vld [vmem:[%s0 + $0x28] sm:$0xf]
    %v96 = vld [vmem:[%s0 + $0x2c] sm:$0xf]
    %v97 = vld [vmem:[%s0 + $0x30] sm:$0xf]
    %v98 = vld [vmem:[%s0 + $0x34] sm:$0xf]
    %v99 = vld [vmem:[%s0 + $0x38] sm:$0xf]
    %v100 = vld [vmem:[%s0 + $0x3c] sm:$0xf]
    %v101 = vld [vmem:[#allocation2] sm:$0xff]
    %v102 = vld [vmem:[#allocation2 + $0x8] sm:$0xf]
    %v103 = vld [vmem:[#allocation2 + $0xc] sm:$0xff]
    %v104 = vld [vmem:[#allocation2 + $0x14] sm:$0xf]
    %v105 = vld [vmem:[#allocation2 + $0x18] sm:$0xff]
    %v106 = vld [vmem:[#allocation2 + $0x20] sm:$0xf]
    %v107 = vld [vmem:[#allocation2 + $0x24] sm:$0xff]
    %v108 = vld [vmem:[#allocation2 + $0x2c] sm:$0xf]
    %v109 = vld [vmem:[#allocation2 + $0x30] sm:$0xff]
    %v110 = vld [vmem:[#allocation2 + $0x38] sm:$0xf]
    %v111 = vld [vmem:[#allocation2 + $0x3c] sm:$0xff]
    %v112 = vld [vmem:[#allocation2 + $0x44] sm:$0xf]
    %v113 = vld [vmem:[#allocation2 + $0x48] sm:$0xff]
    %v114 = vld [vmem:[#allocation2 + $0x50] sm:$0xf]
    %v115 = vld [vmem:[#allocation2 + $0x54] sm:$0xff]
    %v116 = vld [vmem:[#allocation2 + $0x5c] sm:$0xf]
    %v117 = vld [vmem:[#allocation2 + $0x60] sm:$0xff]
    %v118 = vld [vmem:[#allocation2 + $0x68] sm:$0xf]
    %v119 = vld [vmem:[#allocation2 + $0x6c] sm:$0xff]
    %v120 = vld [vmem:[#allocation2 + $0x74] sm:$0xf]
    %v121 = vld [vmem:[#allocation2 + $0x78] sm:$0xff]
    %v122 = vld [vmem:[#allocation2 + $0x80] sm:$0xf]
    %v123 = vld [vmem:[#allocation2 + $0x84] sm:$0xff]
    %v124 = vld [vmem:[#allocation2 + $0x8c] sm:$0xf]
    %v125 = vld [vmem:[#allocation2 + $0x90] sm:$0xff]
    %v126 = vld [vmem:[#allocation2 + $0x98] sm:$0xf]
    %v127 = vld [vmem:[#allocation2 + $0x9c] sm:$0xff]
    %v128 = vld [vmem:[#allocation2 + $0xa4] sm:$0xf]
    %v129 = vld [vmem:[#allocation2 + $0xa8] sm:$0xff]
    %v130 = vld [vmem:[#allocation2 + $0xb0] sm:$0xf]
    %v131 = vld [vmem:[#allocation2 + $0xb4] sm:$0xff]
    %v132 = vld [vmem:[#allocation2 + $0xbc] sm:$0xf]
    %v133 = vld [vmem:[%s2] sm:$0x7]
    %v135 = vperm.slane %v133, 0
    %v136 = vperm.slane %v133, 1
    %v137 = vperm.slane %v133, 2
    %v157 = vunpack.c.l.b16 %v85
    %v158 = vunpack.c.l.b16 %v86
    %v159 = vunpack.c.l.b16 %v87
    %v160 = vunpack.c.l.b16 %v88
    %v161 = vunpack.c.l.b16 %v89
    %v162 = vunpack.c.l.b16 %v90
    %v163 = vunpack.c.l.b16 %v91
    %v164 = vunpack.c.l.b16 %v92
    %v165 = vunpack.c.l.b16 %v93
    %v166 = vunpack.c.l.b16 %v94
    %v167 = vunpack.c.l.b16 %v95
    %v168 = vunpack.c.l.b16 %v96
    %v169 = vunpack.c.l.b16 %v97
    %v170 = vunpack.c.l.b16 %v98
    %v171 = vunpack.c.l.b16 %v99
    %v172 = vunpack.c.l.b16 %v100
    %v173 = vpack.c.b16 %v158, %v157
    %v174 = vpack.c.b16 %v160, %v159
    %v175 = vpack.c.b16 %v162, %v161
    %v176 = vpack.c.b16 %v164, %v163
    %v177 = vpack.c.b16 %v166, %v165
    %v178 = vpack.c.b16 %v168, %v167
    %v179 = vpack.c.b16 %v170, %v169
    %v180 = vpack.c.b16 %v172, %v171
    %v221 = vunpack.c.l.b16 %v101
    %v222 = vunpack.c.h.b16 %v101
    %v223 = vunpack.c.l.b16 %v102
    %v224 = vunpack.c.l.b16 %v103
    %v225 = vunpack.c.h.b16 %v103
    %v226 = vunpack.c.l.b16 %v104
    %v227 = vunpack.c.l.b16 %v105
    %v228 = vunpack.c.h.b16 %v105
    %v229 = vunpack.c.l.b16 %v106
    %v230 = vunpack.c.l.b16 %v107
    %v231 = vunpack.c.h.b16 %v107
    %v232 = vunpack.c.l.b16 %v108
    %v233 = vunpack.c.l.b16 %v109
    %v234 = vunpack.c.h.b16 %v109
    %v235 = vunpack.c.l.b16 %v110
    %v236 = vunpack.c.l.b16 %v111
    %v237 = vunpack.c.h.b16 %v111
    %v238 = vunpack.c.l.b16 %v112
    %v239 = vunpack.c.l.b16 %v113
    %v240 = vunpack.c.h.b16 %v113
    %v241 = vunpack.c.l.b16 %v114
    %v242 = vunpack.c.l.b16 %v115
    %v243 = vunpack.c.h.b16 %v115
    %v244 = vunpack.c.l.b16 %v116
    %v245 = vunpack.c.l.b16 %v117
    %v246 = vunpack.c.h.b16 %v117
    %v247 = vunpack.c.l.b16 %v118
    %v248 = vunpack.c.l.b16 %v119
    %v249 = vunpack.c.h.b16 %v119
    %v250 = vunpack.c.l.b16 %v120
    %v251 = vunpack.c.l.b16 %v121
    %v252 = vunpack.c.h.b16 %v121
    %v253 = vunpack.c.l.b16 %v122
    %v254 = vunpack.c.l.b16 %v123
    %v255 = vunpack.c.h.b16 %v123
    %v256 = vunpack.c.l.b16 %v124
    %v257 = vunpack.c.l.b16 %v125
    %v258 = vunpack.c.h.b16 %v125
    %v259 = vunpack.c.l.b16 %v126
    %v260 = vunpack.c.l.b16 %v127
    %v261 = vunpack.c.h.b16 %v127
    %v262 = vunpack.c.l.b16 %v128
    %v263 = vunpack.c.l.b16 %v129
    %v264 = vunpack.c.h.b16 %v129
    %v265 = vunpack.c.l.b16 %v130
    %v266 = vunpack.c.l.b16 %v131
    %v267 = vunpack.c.h.b16 %v131
    %v268 = vunpack.c.l.b16 %v132
    %v269 = vpack.c.b16 %v224, %v221
    %v270 = vpack.c.b16 %v225, %v222
    %v271 = vpack.c.b16 %v226, %v223
    %v272 = vpack.c.b16 %v230, %v227
    %v273 = vpack.c.b16 %v231, %v228
    %v274 = vpack.c.b16 %v232, %v229
    %v275 = vpack.c.b16 %v236, %v233
    %v276 = vpack.c.b16 %v237, %v234
    %v277 = vpack.c.b16 %v238, %v235
    %v278 = vpack.c.b16 %v242, %v239
    %v279 = vpack.c.b16 %v243, %v240
    %v280 = vpack.c.b16 %v244, %v241
    %v281 = vpack.c.b16 %v248, %v245
    %v282 = vpack.c.b16 %v249, %v246
    %v283 = vpack.c.b16 %v250, %v247
    %v284 = vpack.c.b16 %v254, %v251
    %v285 = vpack.c.b16 %v255, %v252
    %v286 = vpack.c.b16 %v256, %v253
    %v287 = vpack.c.b16 %v260, %v257
    %v288 = vpack.c.b16 %v261, %v258
    %v289 = vpack.c.b16 %v262, %v259
    %v290 = vpack.c.b16 %v266, %v263
    %v291 = vpack.c.b16 %v267, %v264
    %v292 = vpack.c.b16 %v268, %v265
    %317 = vmatpush.bf16.msra.mxu0 %v290
    %318 = vmatpush.bf16.msra.mxu0 %v287
    %319 = vmatpush.bf16.msra.mxu0 %v284
    %320 = vmatpush.bf16.msra.mxu0 %v281
    %321 = vmatpush.bf16.msra.mxu0 %v278
    %322 = vmatpush.bf16.msra.mxu0 %v275
    %323 = vmatpush.bf16.msra.mxu0 %v272
    %324 = vmatpush.bf16.msra.mxu0 %v269
    %325 = vmatmul.bf16.gmra.mxu0 %v173
    %v326 = vpop.f32.mrf.mxu0
    %v327 = vadd.f32 %v135, %v326
    %v328 = vpop.f32.mrf.mxu0
    %v329 = vadd.f32 %v135, %v328
    %330 = vmatmul.bf16.gmra.mxu0 %v174
    %v331 = vpop.f32.mrf.mxu0
    %v332 = vadd.f32 %v135, %v331
    %v333 = vpop.f32.mrf.mxu0
    %v334 = vadd.f32 %v135, %v333
    %335 = vmatmul.bf16.gmra.mxu0 %v175
    %v336 = vpop.f32.mrf.mxu0
    %v337 = vadd.f32 %v135, %v336
    %v338 = vpop.f32.mrf.mxu0
    %v339 = vadd.f32 %v135, %v338
    %340 = vmatmul.bf16.gmra.mxu0 %v176
    %v341 = vpop.f32.mrf.mxu0
    %v342 = vadd.f32 %v135, %v341
    %v343 = vpop.f32.mrf.mxu0
    %v344 = vadd.f32 %v135, %v343
    %345 = vmatmul.bf16.gmra.mxu0 %v177
    %v346 = vpop.f32.mrf.mxu0
    %v347 = vadd.f32 %v135, %v346
    %v348 = vpop.f32.mrf.mxu0
    %v349 = vadd.f32 %v135, %v348
    %350 = vmatmul.bf16.gmra.mxu0 %v178
    %v351 = vpop.f32.mrf.mxu0
    %v352 = vadd.f32 %v135, %v351
    %v353 = vpop.f32.mrf.mxu0
    %v354 = vadd.f32 %v135, %v353
    %355 = vmatmul.bf16.gmra.mxu0 %v179
    %v356 = vpop.f32.mrf.mxu0
    %v357 = vadd.f32 %v135, %v356
    %v358 = vpop.f32.mrf.mxu0
    %v359 = vadd.f32 %v135, %v358
    %360 = vmatmul.bf16.gmra.mxu0 %v180
    %v361 = vpop.f32.mrf.mxu0
    %v362 = vadd.f32 %v135, %v361
    %v363 = vpop.f32.mrf.mxu0
    %v364 = vadd.f32 %v135, %v363
    %365 = vdwg.mxu0
    %366 = vmatpush.bf16.msra.mxu0 %v291
    %367 = vmatpush.bf16.msra.mxu0 %v288
    %368 = vmatpush.bf16.msra.mxu0 %v285
    %369 = vmatpush.bf16.msra.mxu0 %v282
    %370 = vmatpush.bf16.msra.mxu0 %v279
    %371 = vmatpush.bf16.msra.mxu0 %v276
    %372 = vmatpush.bf16.msra.mxu0 %v273
    %373 = vmatpush.bf16.msra.mxu0 %v270
    %374 = vmatmul.bf16.gmra.mxu0 %v173
    %v375 = vpop.f32.mrf.mxu0
    %v376 = vadd.f32 %v136, %v375
    %v377 = vpop.f32.mrf.mxu0
    %v378 = vadd.f32 %v136, %v377
    %379 = vmatmul.bf16.gmra.mxu0 %v174
    %v380 = vpop.f32.mrf.mxu0
    %v381 = vadd.f32 %v136, %v380
    %v382 = vpop.f32.mrf.mxu0
    %v383 = vadd.f32 %v136, %v382
    %384 = vmatmul.bf16.gmra.mxu0 %v175
    %v385 = vpop.f32.mrf.mxu0
    %v386 = vadd.f32 %v136, %v385
    %v387 = vpop.f32.mrf.mxu0
    %v388 = vadd.f32 %v136, %v387
    %389 = vmatmul.bf16.gmra.mxu0 %v176
    %v390 = vpop.f32.mrf.mxu0
    %v391 = vadd.f32 %v136, %v390
    %v392 = vpop.f32.mrf.mxu0
    %v393 = vadd.f32 %v136, %v392
    %394 = vmatmul.bf16.gmra.mxu0 %v177
    %v395 = vpop.f32.mrf.mxu0
    %v396 = vadd.f32 %v136, %v395
    %v397 = vpop.f32.mrf.mxu0
    %v398 = vadd.f32 %v136, %v397
    %399 = vmatmul.bf16.gmra.mxu0 %v178
    %v400 = vpop.f32.mrf.mxu0
    %v401 = vadd.f32 %v136, %v400
    %v402 = vpop.f32.mrf.mxu0
    %v403 = vadd.f32 %v136, %v402
    %404 = vmatmul.bf16.gmra.mxu0 %v179
    %v405 = vpop.f32.mrf.mxu0
    %v406 = vadd.f32 %v136, %v405
    %v407 = vpop.f32.mrf.mxu0
    %v408 = vadd.f32 %v136, %v407
    %409 = vmatmul.bf16.gmra.mxu0 %v180
    %v410 = vpop.f32.mrf.mxu0
    %v411 = vadd.f32 %v136, %v410
    %v412 = vpop.f32.mrf.mxu0
    %v413 = vadd.f32 %v136, %v412
    %414 = vdwg.mxu0
    %415 = vmatpush.bf16.msra.mxu0 %v292
    %416 = vmatpush.bf16.msra.mxu0 %v289
    %417 = vmatpush.bf16.msra.mxu0 %v286
    %418 = vmatpush.bf16.msra.mxu0 %v283
    %419 = vmatpush.bf16.msra.mxu0 %v280
    %420 = vmatpush.bf16.msra.mxu0 %v277
    %421 = vmatpush.bf16.msra.mxu0 %v274
    %422 = vmatpush.bf16.msra.mxu0 %v271
    %423 = vmatmul.bf16.gmra.mxu0 %v173
    %v424 = vpop.f32.mrf.mxu0
    %v425 = vadd.f32 %v137, %v424
    %v426 = vpop.f32.mrf.mxu0
    %v427 = vadd.f32 %v137, %v426
    %428 = vmatmul.bf16.gmra.mxu0 %v174
    %v429 = vpop.f32.mrf.mxu0
    %v430 = vadd.f32 %v137, %v429
    %v431 = vpop.f32.mrf.mxu0
    %v432 = vadd.f32 %v137, %v431
    %433 = vmatmul.bf16.gmra.mxu0 %v175
    %v434 = vpop.f32.mrf.mxu0
    %v435 = vadd.f32 %v137, %v434
    %v436 = vpop.f32.mrf.mxu0
    %v437 = vadd.f32 %v137, %v436
    %438 = vmatmul.bf16.gmra.mxu0 %v176
    %v439 = vpop.f32.mrf.mxu0
    %v440 = vadd.f32 %v137, %v439
    %v441 = vpop.f32.mrf.mxu0
    %v442 = vadd.f32 %v137, %v441
    %443 = vmatmul.bf16.gmra.mxu0 %v177
    %v444 = vpop.f32.mrf.mxu0
    %v445 = vadd.f32 %v137, %v444
    %v446 = vpop.f32.mrf.mxu0
    %v447 = vadd.f32 %v137, %v446
    %448 = vmatmul.bf16.gmra.mxu0 %v178
    %v449 = vpop.f32.mrf.mxu0
    %v450 = vadd.f32 %v137, %v449
    %v451 = vpop.f32.mrf.mxu0
    %v452 = vadd.f32 %v137, %v451
    %453 = vmatmul.bf16.gmra.mxu0 %v179
    %v454 = vpop.f32.mrf.mxu0
    %v455 = vadd.f32 %v137, %v454
    %v456 = vpop.f32.mrf.mxu0
    %v457 = vadd.f32 %v137, %v456
    %458 = vmatmul.bf16.gmra.mxu0 %v180
    %v459 = vpop.f32.mrf.mxu0
    %v460 = vadd.f32 %v137, %v459
    %v461 = vpop.f32.mrf.mxu0
    %v462 = vadd.f32 %v137, %v461
    %463 = vdwg.mxu0
    %v464 = vmax.f32 %v327, 0.0
    %v465 = vmax.f32 %v376, 0.0
    %v466 = vmax.f32 %v425, 0.0
    %v467 = vmax.f32 %v329, 0.0
    %v468 = vmax.f32 %v378, 0.0
    %v469 = vmax.f32 %v427, 0.0
    %v470 = vmax.f32 %v332, 0.0
    %v471 = vmax.f32 %v381, 0.0
    %v472 = vmax.f32 %v430, 0.0
    %v473 = vmax.f32 %v334, 0.0
    %v474 = vmax.f32 %v383, 0.0
    %v475 = vmax.f32 %v432, 0.0
    %v476 = vmax.f32 %v337, 0.0
    %v477 = vmax.f32 %v386, 0.0
    %v478 = vmax.f32 %v435, 0.0
    %v479 = vmax.f32 %v339, 0.0
    %v480 = vmax.f32 %v388, 0.0
    %v481 = vmax.f32 %v437, 0.0
    %v482 = vmax.f32 %v342, 0.0
    %v483 = vmax.f32 %v391, 0.0
    %v484 = vmax.f32 %v440, 0.0
    %v485 = vmax.f32 %v344, 0.0
    %v486 = vmax.f32 %v393, 0.0
    %v487 = vmax.f32 %v442, 0.0
    %v488 = vmax.f32 %v347, 0.0
    %v489 = vmax.f32 %v396, 0.0
    %v490 = vmax.f32 %v445, 0.0
    %v491 = vmax.f32 %v349, 0.0
    %v492 = vmax.f32 %v398, 0.0
    %v493 = vmax.f32 %v447, 0.0
    %v494 = vmax.f32 %v352, 0.0
    %v495 = vmax.f32 %v401, 0.0
    %v496 = vmax.f32 %v450, 0.0
    %v497 = vmax.f32 %v354, 0.0
    %v498 = vmax.f32 %v403, 0.0
    %v499 = vmax.f32 %v452, 0.0
    %v500 = vmax.f32 %v357, 0.0
    %v501 = vmax.f32 %v406, 0.0
    %v502 = vmax.f32 %v455, 0.0
    %v503 = vmax.f32 %v359, 0.0
    %v504 = vmax.f32 %v408, 0.0
    %v505 = vmax.f32 %v457, 0.0
    %v506 = vmax.f32 %v362, 0.0
    %v507 = vmax.f32 %v411, 0.0
    %v508 = vmax.f32 %v460, 0.0
    %v509 = vmax.f32 %v364, 0.0
    %v510 = vmax.f32 %v413, 0.0
    %v511 = vmax.f32 %v462, 0.0
    %v512 = vpack.c.bf16 %v467, %v464
    %v513 = vpack.c.bf16 %v468, %v465
    %v514 = vpack.c.bf16 %v469, %v466
    %v515 = vpack.c.bf16 %v473, %v470
    %v516 = vpack.c.bf16 %v474, %v471
    %v517 = vpack.c.bf16 %v475, %v472
    %v518 = vpack.c.bf16 %v479, %v476
    %v519 = vpack.c.bf16 %v480, %v477
    %v520 = vpack.c.bf16 %v481, %v478
    %v521 = vpack.c.bf16 %v485, %v482
    %v522 = vpack.c.bf16 %v486, %v483
    %v523 = vpack.c.bf16 %v487, %v484
    %v524 = vpack.c.bf16 %v491, %v488
    %v525 = vpack.c.bf16 %v492, %v489
    %v526 = vpack.c.bf16 %v493, %v490
    %v527 = vpack.c.bf16 %v497, %v494
    %v528 = vpack.c.bf16 %v498, %v495
    %v529 = vpack.c.bf16 %v499, %v496
    %v530 = vpack.c.bf16 %v503, %v500
    %v531 = vpack.c.bf16 %v504, %v501
    %v532 = vpack.c.bf16 %v505, %v502
    %v533 = vpack.c.bf16 %v509, %v506
    %v534 = vpack.c.bf16 %v510, %v507
    %v535 = vpack.c.bf16 %v511, %v508
    %v536 = vld [vmem:[#allocation4] sm:$0xff]
    %v537 = vld [vmem:[#allocation4 + $0x8] sm:$0xff]
    %v538 = vld [vmem:[#allocation4 + $0x10] sm:$0xff]
    %v539 = vld [vmem:[#allocation4 + $0x18] sm:$0xff]
    %v540 = vld [vmem:[#allocation4 + $0x20] sm:$0xff]
    %v541 = vld [vmem:[#allocation4 + $0x28] sm:$0xff]
    %v542 = vld [vmem:[#allocation4 + $0x30] sm:$0xff]
    %v543 = vld [vmem:[#allocation4 + $0x38] sm:$0xff]
    %v544 = vld [vmem:[#allocation4 + $0x40] sm:$0xff]
    %v545 = vld [vmem:[#allocation4 + $0x48] sm:$0xff]
    %v546 = vld [vmem:[#allocation4 + $0x50] sm:$0xff]
    %v547 = vld [vmem:[#allocation4 + $0x58] sm:$0xff]
    %v548 = vld [vmem:[#allocation4 + $0x60] sm:$0xff]
    %v549 = vld [vmem:[#allocation4 + $0x68] sm:$0xff]
    %v550 = vld [vmem:[#allocation4 + $0x70] sm:$0xff]
    %v551 = vld [vmem:[#allocation4 + $0x78] sm:$0xff]
    %v552 = vld [vmem:[#allocation4 + $0x80] sm:$0xff]
    %v553 = vld [vmem:[#allocation4 + $0x88] sm:$0xff]
    %v554 = vld [vmem:[#allocation4 + $0x90] sm:$0xff]
    %v555 = vld [vmem:[#allocation4 + $0x98] sm:$0xff]
    %v556 = vld [vmem:[#allocation4 + $0xa0] sm:$0xff]
    %v557 = vld [vmem:[#allocation4 + $0xa8] sm:$0xff]
    %v558 = vld [vmem:[#allocation4 + $0xb0] sm:$0xff]
    %v559 = vld [vmem:[#allocation4 + $0xb8] sm:$0xff]
    %v560 = vld [vmem:[#allocation4 + $0xc0] sm:$0xff]
    %v561 = vld [vmem:[#allocation4 + $0xc8] sm:$0xff]
    %v562 = vld [vmem:[#allocation4 + $0xd0] sm:$0xff]
    %v563 = vld [vmem:[#allocation4 + $0xd8] sm:$0xff]
    %v564 = vld [vmem:[#allocation4 + $0xe0] sm:$0xff]
    %v565 = vld [vmem:[#allocation4 + $0xe8] sm:$0xff]
    %v566 = vld [vmem:[#allocation4 + $0xf0] sm:$0xff]
    %v567 = vld [vmem:[#allocation4 + $0xf8] sm:$0xff]
    %v568 = vld [vmem:[#allocation4 + $0x100] sm:$0xff]
    %v569 = vld [vmem:[#allocation4 + $0x108] sm:$0xff]
    %v570 = vld [vmem:[#allocation4 + $0x110] sm:$0xff]
    %v571 = vld [vmem:[#allocation4 + $0x118] sm:$0xff]
    %v572 = vld [vmem:[#allocation4 + $0x120] sm:$0xff]
    %v573 = vld [vmem:[#allocation4 + $0x128] sm:$0xff]
    %v574 = vld [vmem:[#allocation4 + $0x130] sm:$0xff]
    %v575 = vld [vmem:[#allocation4 + $0x138] sm:$0xff]
    %v576 = vld [vmem:[#allocation4 + $0x140] sm:$0xff]
    %v577 = vld [vmem:[#allocation4 + $0x148] sm:$0xff]
    %v578 = vld [vmem:[#allocation4 + $0x150] sm:$0xff]
    %v579 = vld [vmem:[#allocation4 + $0x158] sm:$0xff]
    %v580 = vld [vmem:[#allocation4 + $0x160] sm:$0xff]
    %v581 = vld [vmem:[#allocation4 + $0x168] sm:$0xff]
    %v582 = vld [vmem:[#allocation4 + $0x170] sm:$0xff]
    %v583 = vld [vmem:[#allocation4 + $0x178] sm:$0xff]
    %v584 = vld [vmem:[%s4] sm:$0x3]
    %v586 = vperm.slane %v584, 0
    %v587 = vperm.slane %v584, 1
    %v638 = vunpack.c.l.b16 %v536
    %v639 = vunpack.c.h.b16 %v536
    %v640 = vunpack.c.l.b16 %v537
    %v641 = vunpack.c.h.b16 %v537
    %v642 = vunpack.c.l.b16 %v538
    %v643 = vunpack.c.h.b16 %v538
    %v644 = vunpack.c.l.b16 %v539
    %v645 = vunpack.c.h.b16 %v539
    %v646 = vunpack.c.l.b16 %v540
    %v647 = vunpack.c.h.b16 %v540
    %v648 = vunpack.c.l.b16 %v541
    %v649 = vunpack.c.h.b16 %v541
    %v650 = vunpack.c.l.b16 %v542
    %v651 = vunpack.c.h.b16 %v542
    %v652 = vunpack.c.l.b16 %v543
    %v653 = vunpack.c.h.b16 %v543
    %v654 = vunpack.c.l.b16 %v544
    %v655 = vunpack.c.h.b16 %v544
    %v656 = vunpack.c.l.b16 %v545
    %v657 = vunpack.c.h.b16 %v545
    %v658 = vunpack.c.l.b16 %v546
    %v659 = vunpack.c.h.b16 %v546
    %v660 = vunpack.c.l.b16 %v547
    %v661 = vunpack.c.h.b16 %v547
    %v662 = vunpack.c.l.b16 %v548
    %v663 = vunpack.c.h.b16 %v548
    %v664 = vunpack.c.l.b16 %v549
    %v665 = vunpack.c.h.b16 %v549
    %v666 = vunpack.c.l.b16 %v550
    %v667 = vunpack.c.h.b16 %v550
    %v668 = vunpack.c.l.b16 %v551
    %v669 = vunpack.c.h.b16 %v551
    %v670 = vunpack.c.l.b16 %v552
    %v671 = vunpack.c.h.b16 %v552
    %v672 = vunpack.c.l.b16 %v553
    %v673 = vunpack.c.h.b16 %v553
    %v674 = vunpack.c.l.b16 %v554
    %v675 = vunpack.c.h.b16 %v554
    %v676 = vunpack.c.l.b16 %v555
    %v677 = vunpack.c.h.b16 %v555
    %v678 = vunpack.c.l.b16 %v556
    %v679 = vunpack.c.h.b16 %v556
    %v680 = vunpack.c.l.b16 %v557
    %v681 = vunpack.c.h.b16 %v557
    %v682 = vunpack.c.l.b16 %v558
    %v683 = vunpack.c.h.b16 %v558
    %v684 = vunpack.c.l.b16 %v559
    %v685 = vunpack.c.h.b16 %v559
    %v686 = vunpack.c.l.b16 %v560
    %v687 = vunpack.c.h.b16 %v560
    %v688 = vunpack.c.l.b16 %v561
    %v689 = vunpack.c.h.b16 %v561
    %v690 = vunpack.c.l.b16 %v562
    %v691 = vunpack.c.h.b16 %v562
    %v692 = vunpack.c.l.b16 %v563
    %v693 = vunpack.c.h.b16 %v563
    %v694 = vunpack.c.l.b16 %v564
    %v695 = vunpack.c.h.b16 %v564
    %v696 = vunpack.c.l.b16 %v565
    %v697 = vunpack.c.h.b16 %v565
    %v698 = vunpack.c.l.b16 %v566
    %v699 = vunpack.c.h.b16 %v566
    %v700 = vunpack.c.l.b16 %v567
    %v701 = vunpack.c.h.b16 %v567
    %v702 = vunpack.c.l.b16 %v568
    %v703 = vunpack.c.h.b16 %v568
    %v704 = vunpack.c.l.b16 %v569
    %v705 = vunpack.c.h.b16 %v569
    %v706 = vunpack.c.l.b16 %v570
    %v707 = vunpack.c.h.b16 %v570
    %v708 = vunpack.c.l.b16 %v571
    %v709 = vunpack.c.h.b16 %v571
    %v710 = vunpack.c.l.b16 %v572
    %v711 = vunpack.c.h.b16 %v572
    %v712 = vunpack.c.l.b16 %v573
    %v713 = vunpack.c.h.b16 %v573
    %v714 = vunpack.c.l.b16 %v574
    %v715 = vunpack.c.h.b16 %v574
    %v716 = vunpack.c.l.b16 %v575
    %v717 = vunpack.c.h.b16 %v575
    %v718 = vunpack.c.l.b16 %v576
    %v719 = vunpack.c.h.b16 %v576
    %v720 = vunpack.c.l.b16 %v577
    %v721 = vunpack.c.h.b16 %v577
    %v722 = vunpack.c.l.b16 %v578
    %v723 = vunpack.c.h.b16 %v578
    %v724 = vunpack.c.l.b16 %v579
    %v725 = vunpack.c.h.b16 %v579
    %v726 = vunpack.c.l.b16 %v580
    %v727 = vunpack.c.h.b16 %v580
    %v728 = vunpack.c.l.b16 %v581
    %v729 = vunpack.c.h.b16 %v581
    %v730 = vunpack.c.l.b16 %v582
    %v731 = vunpack.c.h.b16 %v582
    %v732 = vunpack.c.l.b16 %v583
    %v733 = vunpack.c.h.b16 %v583
    %v734 = vpack.c.b16 %v640, %v638
    %v735 = vpack.c.b16 %v641, %v639
    %v736 = vpack.c.b16 %v644, %v642
    %v737 = vpack.c.b16 %v645, %v643
    %v738 = vpack.c.b16 %v648, %v646
    %v739 = vpack.c.b16 %v649, %v647
    %v740 = vpack.c.b16 %v652, %v650
    %v741 = vpack.c.b16 %v653, %v651
    %v742 = vpack.c.b16 %v656, %v654
    %v743 = vpack.c.b16 %v657, %v655
    %v744 = vpack.c.b16 %v660, %v658
    %v745 = vpack.c.b16 %v661, %v659
    %v746 = vpack.c.b16 %v664, %v662
    %v747 = vpack.c.b16 %v665, %v663
    %v748 = vpack.c.b16 %v668, %v666
    %v749 = vpack.c.b16 %v669, %v667
    %v750 = vpack.c.b16 %v672, %v670
    %v751 = vpack.c.b16 %v673, %v671
    %v752 = vpack.c.b16 %v676, %v674
    %v753 = vpack.c.b16 %v677, %v675
    %v754 = vpack.c.b16 %v680, %v678
    %v755 = vpack.c.b16 %v681, %v679
    %v756 = vpack.c.b16 %v684, %v682
    %v757 = vpack.c.b16 %v685, %v683
    %v758 = vpack.c.b16 %v688, %v686
    %v759 = vpack.c.b16 %v689, %v687
    %v760 = vpack.c.b16 %v692, %v690
    %v761 = vpack.c.b16 %v693, %v691
    %v762 = vpack.c.b16 %v696, %v694
    %v763 = vpack.c.b16 %v697, %v695
    %v764 = vpack.c.b16 %v700, %v698
    %v765 = vpack.c.b16 %v701, %v699
    %v766 = vpack.c.b16 %v704, %v702
    %v767 = vpack.c.b16 %v705, %v703
    %v768 = vpack.c.b16 %v708, %v706
    %v769 = vpack.c.b16 %v709, %v707
    %v770 = vpack.c.b16 %v712, %v710
    %v771 = vpack.c.b16 %v713, %v711
    %v772 = vpack.c.b16 %v716, %v714
    %v773 = vpack.c.b16 %v717, %v715
    %v774 = vpack.c.b16 %v720, %v718
    %v775 = vpack.c.b16 %v721, %v719
    %v776 = vpack.c.b16 %v724, %v722
    %v777 = vpack.c.b16 %v725, %v723
    %v778 = vpack.c.b16 %v728, %v726
    %v779 = vpack.c.b16 %v729, %v727
    %v780 = vpack.c.b16 %v732, %v730
    %v781 = vpack.c.b16 %v733, %v731
    %830 = vmatpush.bf16.msra.mxu0 %v748
    %831 = vmatpush.bf16.msra.mxu0 %v746
    %832 = vmatpush.bf16.msra.mxu0 %v744
    %833 = vmatpush.bf16.msra.mxu0 %v742
    %834 = vmatpush.bf16.msra.mxu0 %v740
    %835 = vmatpush.bf16.msra.mxu0 %v738
    %836 = vmatpush.bf16.msra.mxu0 %v736
    %837 = vmatpush.bf16.msra.mxu0 %v734
    %838 = vmatmul.bf16.gmra.mxu0 %v512
    %v839 = vpop.f32.mrf.mxu0
    %v840 = vadd.f32 %v586, %v839
    %v841 = vpop.f32.mrf.mxu0
    %v842 = vadd.f32 %v586, %v841
    %843 = vmatmul.bf16.gmra.mxu0 %v515
    %v844 = vpop.f32.mrf.mxu0
    %v845 = vadd.f32 %v586, %v844
    %v846 = vpop.f32.mrf.mxu0
    %v847 = vadd.f32 %v586, %v846
    %848 = vmatmul.bf16.gmra.mxu0 %v518
    %v849 = vpop.f32.mrf.mxu0
    %v850 = vadd.f32 %v586, %v849
    %v851 = vpop.f32.mrf.mxu0
    %v852 = vadd.f32 %v586, %v851
    %853 = vmatmul.bf16.gmra.mxu0 %v521
    %v854 = vpop.f32.mrf.mxu0
    %v855 = vadd.f32 %v586, %v854
    %v856 = vpop.f32.mrf.mxu0
    %v857 = vadd.f32 %v586, %v856
    %858 = vmatmul.bf16.gmra.mxu0 %v524
    %v859 = vpop.f32.mrf.mxu0
    %v860 = vadd.f32 %v586, %v859
    %v861 = vpop.f32.mrf.mxu0
    %v862 = vadd.f32 %v586, %v861
    %863 = vmatmul.bf16.gmra.mxu0 %v527
    %v864 = vpop.f32.mrf.mxu0
    %v865 = vadd.f32 %v586, %v864
    %v866 = vpop.f32.mrf.mxu0
    %v867 = vadd.f32 %v586, %v866
    %868 = vmatmul.bf16.gmra.mxu0 %v530
    %v869 = vpop.f32.mrf.mxu0
    %v870 = vadd.f32 %v586, %v869
    %v871 = vpop.f32.mrf.mxu0
    %v872 = vadd.f32 %v586, %v871
    %873 = vmatmul.bf16.gmra.mxu0 %v533
    %v874 = vpop.f32.mrf.mxu0
    %v875 = vadd.f32 %v586, %v874
    %v876 = vpop.f32.mrf.mxu0
    %v877 = vadd.f32 %v586, %v876
    %878 = vdwg.mxu0
    %879 = vmatpush.bf16.msra.mxu0 %v764
    %880 = vmatpush.bf16.msra.mxu0 %v762
    %881 = vmatpush.bf16.msra.mxu0 %v760
    %882 = vmatpush.bf16.msra.mxu0 %v758
    %883 = vmatpush.bf16.msra.mxu0 %v756
    %884 = vmatpush.bf16.msra.mxu0 %v754
    %885 = vmatpush.bf16.msra.mxu0 %v752
    %886 = vmatpush.bf16.msra.mxu0 %v750
    %887 = vmatmul.bf16.gmra.mxu0 %v513
    %v888 = vpop.f32.mrf.mxu0
    %v889 = vadd.f32 %v840, %v888
    %v890 = vpop.f32.mrf.mxu0
    %v891 = vadd.f32 %v842, %v890
    %892 = vmatmul.bf16.gmra.mxu0 %v516
    %v893 = vpop.f32.mrf.mxu0
    %v894 = vadd.f32 %v845, %v893
    %v895 = vpop.f32.mrf.mxu0
    %v896 = vadd.f32 %v847, %v895
    %897 = vmatmul.bf16.gmra.mxu0 %v519
    %v898 = vpop.f32.mrf.mxu0
    %v899 = vadd.f32 %v850, %v898
    %v900 = vpop.f32.mrf.mxu0
    %v901 = vadd.f32 %v852, %v900
    %902 = vmatmul.bf16.gmra.mxu0 %v522
    %v903 = vpop.f32.mrf.mxu0
    %v904 = vadd.f32 %v855, %v903
    %v905 = vpop.f32.mrf.mxu0
    %v906 = vadd.f32 %v857, %v905
    %907 = vmatmul.bf16.gmra.mxu0 %v525
    %v908 = vpop.f32.mrf.mxu0
    %v909 = vadd.f32 %v860, %v908
    %v910 = vpop.f32.mrf.mxu0
    %v911 = vadd.f32 %v862, %v910
    %912 = vmatmul.bf16.gmra.mxu0 %v528
    %v913 = vpop.f32.mrf.mxu0
    %v914 = vadd.f32 %v865, %v913
    %v915 = vpop.f32.mrf.mxu0
    %v916 = vadd.f32 %v867, %v915
    %917 = vmatmul.bf16.gmra.mxu0 %v531
    %v918 = vpop.f32.mrf.mxu0
    %v919 = vadd.f32 %v870, %v918
    %v920 = vpop.f32.mrf.mxu0
    %v921 = vadd.f32 %v872, %v920
    %922 = vmatmul.bf16.gmra.mxu0 %v534
    %v923 = vpop.f32.mrf.mxu0
    %v924 = vadd.f32 %v875, %v923
    %v925 = vpop.f32.mrf.mxu0
    %v926 = vadd.f32 %v877, %v925
    %927 = vdwg.mxu0
    %928 = vmatpush.bf16.msra.mxu0 %v780
    %929 = vmatpush.bf16.msra.mxu0 %v778
    %930 = vmatpush.bf16.msra.mxu0 %v776
    %931 = vmatpush.bf16.msra.mxu0 %v774
    %932 = vmatpush.bf16.msra.mxu0 %v772
    %933 = vmatpush.bf16.msra.mxu0 %v770
    %934 = vmatpush.bf16.msra.mxu0 %v768
    %935 = vmatpush.bf16.msra.mxu0 %v766
    %936 = vmatmul.bf16.gmra.mxu0 %v514
    %v937 = vpop.f32.mrf.mxu0
    %v938 = vadd.f32 %v889, %v937
    %v939 = vpop.f32.mrf.mxu0
    %v940 = vadd.f32 %v891, %v939
    %941 = vmatmul.bf16.gmra.mxu0 %v517
    %v942 = vpop.f32.mrf.mxu0
    %v943 = vadd.f32 %v894, %v942
    %v944 = vpop.f32.mrf.mxu0
    %v945 = vadd.f32 %v896, %v944
    %946 = vmatmul.bf16.gmra.mxu0 %v520
    %v947 = vpop.f32.mrf.mxu0
    %v948 = vadd.f32 %v899, %v947
    %v949 = vpop.f32.mrf.mxu0
    %v950 = vadd.f32 %v901, %v949
    %951 = vmatmul.bf16.gmra.mxu0 %v523
    %v952 = vpop.f32.mrf.mxu0
    %v953 = vadd.f32 %v904, %v952
    %v954 = vpop.f32.mrf.mxu0
    %v955 = vadd.f32 %v906, %v954
    %956 = vmatmul.bf16.gmra.mxu0 %v526
    %v957 = vpop.f32.mrf.mxu0
    %v958 = vadd.f32 %v909, %v957
    %v959 = vpop.f32.mrf.mxu0
    %v960 = vadd.f32 %v911, %v959
    %961 = vmatmul.bf16.gmra.mxu0 %v529
    %v962 = vpop.f32.mrf.mxu0
    %v963 = vadd.f32 %v914, %v962
    %v964 = vpop.f32.mrf.mxu0
    %v965 = vadd.f32 %v916, %v964
    %966 = vmatmul.bf16.gmra.mxu0 %v532
    %v967 = vpop.f32.mrf.mxu0
    %v968 = vadd.f32 %v919, %v967
    %v969 = vpop.f32.mrf.mxu0
    %v970 = vadd.f32 %v921, %v969
    %971 = vmatmul.bf16.gmra.mxu0 %v535
    %v972 = vpop.f32.mrf.mxu0
    %v973 = vadd.f32 %v924, %v972
    %v974 = vpop.f32.mrf.mxu0
    %v975 = vadd.f32 %v926, %v974
    %976 = vdwg.mxu0
    %977 = vmatpush.bf16.msra.mxu0 %v749
    %978 = vmatpush.bf16.msra.mxu0 %v747
    %979 = vmatpush.bf16.msra.mxu0 %v745
    %980 = vmatpush.bf16.msra.mxu0 %v743
    %981 = vmatpush.bf16.msra.mxu0 %v741
    %982 = vmatpush.bf16.msra.mxu0 %v739
    %983 = vmatpush.bf16.msra.mxu0 %v737
    %984 = vmatpush.bf16.msra.mxu0 %v735
    %985 = vmatmul.bf16.gmra.mxu0 %v512
    %v986 = vpop.f32.mrf.mxu0
    %v987 = vadd.f32 %v587, %v986
    %v988 = vpop.f32.mrf.mxu0
    %v989 = vadd.f32 %v587, %v988
    %990 = vmatmul.bf16.gmra.mxu0 %v515
    %v991 = vpop.f32.mrf.mxu0
    %v992 = vadd.f32 %v587, %v991
    %v993 = vpop.f32.mrf.mxu0
    %v994 = vadd.f32 %v587, %v993
    %995 = vmatmul.bf16.gmra.mxu0 %v518
    %v996 = vpop.f32.mrf.mxu0
    %v997 = vadd.f32 %v587, %v996
    %v998 = vpop.f32.mrf.mxu0
    %v999 = vadd.f32 %v587, %v998
    %1000 = vmatmul.bf16.gmra.mxu0 %v521
    %v1001 = vpop.f32.mrf.mxu0
    %v1002 = vadd.f32 %v587, %v1001
    %v1003 = vpop.f32.mrf.mxu0
    %v1004 = vadd.f32 %v587, %v1003
    %1005 = vmatmul.bf16.gmra.mxu0 %v524
    %v1006 = vpop.f32.mrf.mxu0
    %v1007 = vadd.f32 %v587, %v1006
    %v1008 = vpop.f32.mrf.mxu0
    %v1009 = vadd.f32 %v587, %v1008
    %1010 = vmatmul.bf16.gmra.mxu0 %v527
    %v1011 = vpop.f32.mrf.mxu0
    %v1012 = vadd.f32 %v587, %v1011
    %v1013 = vpop.f32.mrf.mxu0
    %v1014 = vadd.f32 %v587, %v1013
    %1015 = vmatmul.bf16.gmra.mxu0 %v530
    %v1016 = vpop.f32.mrf.mxu0
    %v1017 = vadd.f32 %v587, %v1016
    %v1018 = vpop.f32.mrf.mxu0
    %v1019 = vadd.f32 %v587, %v1018
    %1020 = vmatmul.bf16.gmra.mxu0 %v533
    %v1021 = vpop.f32.mrf.mxu0
    %v1022 = vadd.f32 %v587, %v1021
    %v1023 = vpop.f32.mrf.mxu0
    %v1024 = vadd.f32 %v587, %v1023
    %1025 = vdwg.mxu0
    %1026 = vmatpush.bf16.msra.mxu0 %v765
    %1027 = vmatpush.bf16.msra.mxu0 %v763
    %1028 = vmatpush.bf16.msra.mxu0 %v761
    %1029 = vmatpush.bf16.msra.mxu0 %v759
    %1030 = vmatpush.bf16.msra.mxu0 %v757
    %1031 = vmatpush.bf16.msra.mxu0 %v755
    %1032 = vmatpush.bf16.msra.mxu0 %v753
    %1033 = vmatpush.bf16.msra.mxu0 %v751
    %1034 = vmatmul.bf16.gmra.mxu0 %v513
    %v1035 = vpop.f32.mrf.mxu0
    %v1036 = vadd.f32 %v987, %v1035
    %v1037 = vpop.f32.mrf.mxu0
    %v1038 = vadd.f32 %v989, %v1037
    %1039 = vmatmul.bf16.gmra.mxu0 %v516
    %v1040 = vpop.f32.mrf.mxu0
    %v1041 = vadd.f32 %v992, %v1040
    %v1042 = vpop.f32.mrf.mxu0
    %v1043 = vadd.f32 %v994, %v1042
    %1044 = vmatmul.bf16.gmra.mxu0 %v519
    %v1045 = vpop.f32.mrf.mxu0
    %v1046 = vadd.f32 %v997, %v1045
    %v1047 = vpop.f32.mrf.mxu0
    %v1048 = vadd.f32 %v999, %v1047
    %1049 = vmatmul.bf16.gmra.mxu0 %v522
    %v1050 = vpop.f32.mrf.mxu0
    %v1051 = vadd.f32 %v1002, %v1050
    %v1052 = vpop.f32.mrf.mxu0
    %v1053 = vadd.f32 %v1004, %v1052
    %1054 = vmatmul.bf16.gmra.mxu0 %v525
    %v1055 = vpop.f32.mrf.mxu0
    %v1056 = vadd.f32 %v1007, %v1055
    %v1057 = vpop.f32.mrf.mxu0
    %v1058 = vadd.f32 %v1009, %v1057
    %1059 = vmatmul.bf16.gmra.mxu0 %v528
    %v1060 = vpop.f32.mrf.mxu0
    %v1061 = vadd.f32 %v1012, %v1060
    %v1062 = vpop.f32.mrf.mxu0
    %v1063 = vadd.f32 %v1014, %v1062
    %1064 = vmatmul.bf16.gmra.mxu0 %v531
    %v1065 = vpop.f32.mrf.mxu0
    %v1066 = vadd.f32 %v1017, %v1065
    %v1067 = vpop.f32.mrf.mxu0
    %v1068 = vadd.f32 %v1019, %v1067
    %1069 = vmatmul.bf16.gmra.mxu0 %v534
    %v1070 = vpop.f32.mrf.mxu0
    %v1071 = vadd.f32 %v1022, %v1070
    %v1072 = vpop.f32.mrf.mxu0
    %v1073 = vadd.f32 %v1024, %v1072
    %1074 = vdwg.mxu0
    %1075 = vmatpush.bf16.msra.mxu0 %v781
    %1076 = vmatpush.bf16.msra.mxu0 %v779
    %1077 = vmatpush.bf16.msra.mxu0 %v777
    %1078 = vmatpush.bf16.msra.mxu0 %v775
    %1079 = vmatpush.bf16.msra.mxu0 %v773
    %1080 = vmatpush.bf16.msra.mxu0 %v771
    %1081 = vmatpush.bf16.msra.mxu0 %v769
    %1082 = vmatpush.bf16.msra.mxu0 %v767
    %1083 = vmatmul.bf16.gmra.mxu0 %v514
    %v1084 = vpop.f32.mrf.mxu0
    %v1085 = vadd.f32 %v1036, %v1084
    %v1086 = vpop.f32.mrf.mxu0
    %v1087 = vadd.f32 %v1038, %v1086
    %1088 = vmatmul.bf16.gmra.mxu0 %v517
    %v1089 = vpop.f32.mrf.mxu0
    %v1090 = vadd.f32 %v1041, %v1089
    %v1091 = vpop.f32.mrf.mxu0
    %v1092 = vadd.f32 %v1043, %v1091
    %1093 = vmatmul.bf16.gmra.mxu0 %v520
    %v1094 = vpop.f32.mrf.mxu0
    %v1095 = vadd.f32 %v1046, %v1094
    %v1096 = vpop.f32.mrf.mxu0
    %v1097 = vadd.f32 %v1048, %v1096
    %1098 = vmatmul.bf16.gmra.mxu0 %v523
    %v1099 = vpop.f32.mrf.mxu0
    %v1100 = vadd.f32 %v1051, %v1099
    %v1101 = vpop.f32.mrf.mxu0
    %v1102 = vadd.f32 %v1053, %v1101
    %1103 = vmatmul.bf16.gmra.mxu0 %v526
    %v1104 = vpop.f32.mrf.mxu0
    %v1105 = vadd.f32 %v1056, %v1104
    %v1106 = vpop.f32.mrf.mxu0
    %v1107 = vadd.f32 %v1058, %v1106
    %1108 = vmatmul.bf16.gmra.mxu0 %v529
    %v1109 = vpop.f32.mrf.mxu0
    %v1110 = vadd.f32 %v1061, %v1109
    %v1111 = vpop.f32.mrf.mxu0
    %v1112 = vadd.f32 %v1063, %v1111
    %1113 = vmatmul.bf16.gmra.mxu0 %v532
    %v1114 = vpop.f32.mrf.mxu0
    %v1115 = vadd.f32 %v1066, %v1114
    %v1116 = vpop.f32.mrf.mxu0
    %v1117 = vadd.f32 %v1068, %v1116
    %1118 = vmatmul.bf16.gmra.mxu0 %v535
    %v1119 = vpop.f32.mrf.mxu0
    %v1120 = vadd.f32 %v1071, %v1119
    %v1121 = vpop.f32.mrf.mxu0
    %v1122 = vadd.f32 %v1073, %v1121
    %1123 = vdwg.mxu0
    %v1124 = vmax.f32 %v938, 0.0
    %v1125 = vmax.f32 %v1085, 0.0
    %v1126 = vmax.f32 %v940, 0.0
    %v1127 = vmax.f32 %v1087, 0.0
    %v1128 = vmax.f32 %v943, 0.0
    %v1129 = vmax.f32 %v1090, 0.0
    %v1130 = vmax.f32 %v945, 0.0
    %v1131 = vmax.f32 %v1092, 0.0
    %v1132 = vmax.f32 %v948, 0.0
    %v1133 = vmax.f32 %v1095, 0.0
    %v1134 = vmax.f32 %v950, 0.0
    %v1135 = vmax.f32 %v1097, 0.0
    %v1136 = vmax.f32 %v953, 0.0
    %v1137 = vmax.f32 %v1100, 0.0
    %v1138 = vmax.f32 %v955, 0.0
    %v1139 = vmax.f32 %v1102, 0.0
    %v1140 = vmax.f32 %v958, 0.0
    %v1141 = vmax.f32 %v1105, 0.0
    %v1142 = vmax.f32 %v960, 0.0
    %v1143 = vmax.f32 %v1107, 0.0
    %v1144 = vmax.f32 %v963, 0.0
    %v1145 = vmax.f32 %v1110, 0.0
    %v1146 = vmax.f32 %v965, 0.0
    %v1147 = vmax.f32 %v1112, 0.0
    %v1148 = vmax.f32 %v968, 0.0
    %v1149 = vmax.f32 %v1115, 0.0
    %v1150 = vmax.f32 %v970, 0.0
    %v1151 = vmax.f32 %v1117, 0.0
    %v1152 = vmax.f32 %v973, 0.0
    %v1153 = vmax.f32 %v1120, 0.0
    %v1154 = vmax.f32 %v975, 0.0
    %v1155 = vmax.f32 %v1122, 0.0
    %v1156 = vpack.c.bf16 %v1126, %v1124
    %v1157 = vpack.c.bf16 %v1127, %v1125
    %v1158 = vpack.c.bf16 %v1130, %v1128
    %v1159 = vpack.c.bf16 %v1131, %v1129
    %v1160 = vpack.c.bf16 %v1134, %v1132
    %v1161 = vpack.c.bf16 %v1135, %v1133
    %v1162 = vpack.c.bf16 %v1138, %v1136
    %v1163 = vpack.c.bf16 %v1139, %v1137
    %v1164 = vpack.c.bf16 %v1142, %v1140
    %v1165 = vpack.c.bf16 %v1143, %v1141
    %v1166 = vpack.c.bf16 %v1146, %v1144
    %v1167 = vpack.c.bf16 %v1147, %v1145
    %v1168 = vpack.c.bf16 %v1150, %v1148
    %v1169 = vpack.c.bf16 %v1151, %v1149
    %v1170 = vpack.c.bf16 %v1154, %v1152
    %v1171 = vpack.c.bf16 %v1155, %v1153
    %v1172 = vld [vmem:[#allocation6] sm:$0xf]
    %v1173 = vld [vmem:[#allocation6 + $0x4] sm:$0xf]
    %v1174 = vld [vmem:[#allocation6 + $0x8] sm:$0xf]
    %v1175 = vld [vmem:[#allocation6 + $0xc] sm:$0xf]
    %v1176 = vld [vmem:[#allocation6 + $0x10] sm:$0xf]
    %v1177 = vld [vmem:[#allocation6 + $0x14] sm:$0xf]
    %v1178 = vld [vmem:[#allocation6 + $0x18] sm:$0xf]
    %v1179 = vld [vmem:[#allocation6 + $0x1c] sm:$0xf]
    %v1180 = vld [vmem:[#allocation6 + $0x20] sm:$0xf]
    %v1181 = vld [vmem:[#allocation6 + $0x24] sm:$0xf]
    %v1182 = vld [vmem:[#allocation6 + $0x28] sm:$0xf]
    %v1183 = vld [vmem:[#allocation6 + $0x2c] sm:$0xf]
    %v1184 = vld [vmem:[#allocation6 + $0x30] sm:$0xf]
    %v1185 = vld [vmem:[#allocation6 + $0x34] sm:$0xf]
    %v1186 = vld [vmem:[#allocation6 + $0x38] sm:$0xf]
    %v1187 = vld [vmem:[#allocation6 + $0x3c] sm:$0xf]
    %v1188 = vld [vmem:[#allocation6 + $0x40] sm:$0xf]
    %v1189 = vld [vmem:[#allocation6 + $0x44] sm:$0xf]
    %v1190 = vld [vmem:[#allocation6 + $0x48] sm:$0xf]
    %v1191 = vld [vmem:[#allocation6 + $0x4c] sm:$0xf]
    %v1192 = vld [vmem:[#allocation6 + $0x50] sm:$0xf]
    %v1193 = vld [vmem:[#allocation6 + $0x54] sm:$0xf]
    %v1194 = vld [vmem:[#allocation6 + $0x58] sm:$0xf]
    %v1195 = vld [vmem:[#allocation6 + $0x5c] sm:$0xf]
    %v1196 = vld [vmem:[#allocation6 + $0x60] sm:$0xf]
    %v1197 = vld [vmem:[#allocation6 + $0x64] sm:$0xf]
    %v1198 = vld [vmem:[#allocation6 + $0x68] sm:$0xf]
    %v1199 = vld [vmem:[#allocation6 + $0x6c] sm:$0xf]
    %v1200 = vld [vmem:[#allocation6 + $0x70] sm:$0xf]
    %v1201 = vld [vmem:[#allocation6 + $0x74] sm:$0xf]
    %v1202 = vld [vmem:[#allocation6 + $0x78] sm:$0xf]
    %v1203 = vld [vmem:[#allocation6 + $0x7c] sm:$0xf]
    %v1204 = vld [vmem:[%s6] sm:$0x1]
    %v1206 = vperm.slane %v1204, 0
    %v1240 = vunpack.c.l.b16 %v1172
    %v1241 = vunpack.c.l.b16 %v1173
    %v1242 = vunpack.c.l.b16 %v1174
    %v1243 = vunpack.c.l.b16 %v1175
    %v1244 = vunpack.c.l.b16 %v1176
    %v1245 = vunpack.c.l.b16 %v1177
    %v1246 = vunpack.c.l.b16 %v1178
    %v1247 = vunpack.c.l.b16 %v1179
    %v1248 = vunpack.c.l.b16 %v1180
    %v1249 = vunpack.c.l.b16 %v1181
    %v1250 = vunpack.c.l.b16 %v1182
    %v1251 = vunpack.c.l.b16 %v1183
    %v1252 = vunpack.c.l.b16 %v1184
    %v1253 = vunpack.c.l.b16 %v1185
    %v1254 = vunpack.c.l.b16 %v1186
    %v1255 = vunpack.c.l.b16 %v1187
    %v1256 = vunpack.c.l.b16 %v1188
    %v1257 = vunpack.c.l.b16 %v1189
    %v1258 = vunpack.c.l.b16 %v1190
    %v1259 = vunpack.c.l.b16 %v1191
    %v1260 = vunpack.c.l.b16 %v1192
    %v1261 = vunpack.c.l.b16 %v1193
    %v1262 = vunpack.c.l.b16 %v1194
    %v1263 = vunpack.c.l.b16 %v1195
    %v1264 = vunpack.c.l.b16 %v1196
    %v1265 = vunpack.c.l.b16 %v1197
    %v1266 = vunpack.c.l.b16 %v1198
    %v1267 = vunpack.c.l.b16 %v1199
    %v1268 = vunpack.c.l.b16 %v1200
    %v1269 = vunpack.c.l.b16 %v1201
    %v1270 = vunpack.c.l.b16 %v1202
    %v1271 = vunpack.c.l.b16 %v1203
    %v1272 = vpack.c.b16 %v1241, %v1240
    %v1273 = vpack.c.b16 %v1243, %v1242
    %v1274 = vpack.c.b16 %v1245, %v1244
    %v1275 = vpack.c.b16 %v1247, %v1246
    %v1276 = vpack.c.b16 %v1249, %v1248
    %v1277 = vpack.c.b16 %v1251, %v1250
    %v1278 = vpack.c.b16 %v1253, %v1252
    %v1279 = vpack.c.b16 %v1255, %v1254
    %v1280 = vpack.c.b16 %v1257, %v1256
    %v1281 = vpack.c.b16 %v1259, %v1258
    %v1282 = vpack.c.b16 %v1261, %v1260
    %v1283 = vpack.c.b16 %v1263, %v1262
    %v1284 = vpack.c.b16 %v1265, %v1264
    %v1285 = vpack.c.b16 %v1267, %v1266
    %v1286 = vpack.c.b16 %v1269, %v1268
    %v1287 = vpack.c.b16 %v1271, %v1270
    %1304 = vmatpush.bf16.msra.mxu0 %v1279
    %1305 = vmatpush.bf16.msra.mxu0 %v1278
    %1306 = vmatpush.bf16.msra.mxu0 %v1277
    %1307 = vmatpush.bf16.msra.mxu0 %v1276
    %1308 = vmatpush.bf16.msra.mxu0 %v1275
    %1309 = vmatpush.bf16.msra.mxu0 %v1274
    %1310 = vmatpush.bf16.msra.mxu0 %v1273
    %1311 = vmatpush.bf16.msra.mxu0 %v1272
    %1312 = vmatmul.bf16.gmra.mxu0 %v1156
    %v1313 = vpop.f32.mrf.mxu0
    %v1314 = vadd.f32 %v1206, %v1313
    %v1315 = vpop.f32.mrf.mxu0
    %v1316 = vadd.f32 %v1206, %v1315
    %1317 = vmatmul.bf16.gmra.mxu0 %v1158
    %v1318 = vpop.f32.mrf.mxu0
    %v1319 = vadd.f32 %v1206, %v1318
    %v1320 = vpop.f32.mrf.mxu0
    %v1321 = vadd.f32 %v1206, %v1320
    %1322 = vmatmul.bf16.gmra.mxu0 %v1160
    %v1323 = vpop.f32.mrf.mxu0
    %v1324 = vadd.f32 %v1206, %v1323
    %v1325 = vpop.f32.mrf.mxu0
    %v1326 = vadd.f32 %v1206, %v1325
    %1327 = vmatmul.bf16.gmra.mxu0 %v1162
    %v1328 = vpop.f32.mrf.mxu0
    %v1329 = vadd.f32 %v1206, %v1328
    %v1330 = vpop.f32.mrf.mxu0
    %v1331 = vadd.f32 %v1206, %v1330
    %1332 = vmatmul.bf16.gmra.mxu0 %v1164
    %v1333 = vpop.f32.mrf.mxu0
    %v1334 = vadd.f32 %v1206, %v1333
    %v1335 = vpop.f32.mrf.mxu0
    %v1336 = vadd.f32 %v1206, %v1335
    %1337 = vmatmul.bf16.gmra.mxu0 %v1166
    %v1338 = vpop.f32.mrf.mxu0
    %v1339 = vadd.f32 %v1206, %v1338
    %v1340 = vpop.f32.mrf.mxu0
    %v1341 = vadd.f32 %v1206, %v1340
    %1342 = vmatmul.bf16.gmra.mxu0 %v1168
    %v1343 = vpop.f32.mrf.mxu0
    %v1344 = vadd.f32 %v1206, %v1343
    %v1345 = vpop.f32.mrf.mxu0
    %v1346 = vadd.f32 %v1206, %v1345
    %1347 = vmatmul.bf16.gmra.mxu0 %v1170
    %v1348 = vpop.f32.mrf.mxu0
    %v1349 = vadd.f32 %v1206, %v1348
    %v1350 = vpop.f32.mrf.mxu0
    %v1351 = vadd.f32 %v1206, %v1350
    %1352 = vdwg.mxu0
    %1353 = vmatpush.bf16.msra.mxu0 %v1287
    %1354 = vmatpush.bf16.msra.mxu0 %v1286
    %1355 = vmatpush.bf16.msra.mxu0 %v1285
    %1356 = vmatpush.bf16.msra.mxu0 %v1284
    %1357 = vmatpush.bf16.msra.mxu0 %v1283
    %1358 = vmatpush.bf16.msra.mxu0 %v1282
    %1359 = vmatpush.bf16.msra.mxu0 %v1281
    %1360 = vmatpush.bf16.msra.mxu0 %v1280
    %1361 = vmatmul.bf16.gmra.mxu0 %v1157
    %v1362 = vpop.f32.mrf.mxu0
    %v1363 = vadd.f32 %v1314, %v1362
    %v1364 = vpop.f32.mrf.mxu0
    %v1365 = vadd.f32 %v1316, %v1364
    %1366 = vmatmul.bf16.gmra.mxu0 %v1159
    %v1367 = vpop.f32.mrf.mxu0
    %v1368 = vadd.f32 %v1319, %v1367
    %v1369 = vpop.f32.mrf.mxu0
    %v1370 = vadd.f32 %v1321, %v1369
    %1371 = vmatmul.bf16.gmra.mxu0 %v1161
    %v1372 = vpop.f32.mrf.mxu0
    %v1373 = vadd.f32 %v1324, %v1372
    %v1374 = vpop.f32.mrf.mxu0
    %v1375 = vadd.f32 %v1326, %v1374
    %1376 = vmatmul.bf16.gmra.mxu0 %v1163
    %v1377 = vpop.f32.mrf.mxu0
    %v1378 = vadd.f32 %v1329, %v1377
    %v1379 = vpop.f32.mrf.mxu0
    %v1380 = vadd.f32 %v1331, %v1379
    %1381 = vmatmul.bf16.gmra.mxu0 %v1165
    %v1382 = vpop.f32.mrf.mxu0
    %v1383 = vadd.f32 %v1334, %v1382
    %v1384 = vpop.f32.mrf.mxu0
    %v1385 = vadd.f32 %v1336, %v1384
    %1386 = vmatmul.bf16.gmra.mxu0 %v1167
    %v1387 = vpop.f32.mrf.mxu0
    %v1388 = vadd.f32 %v1339, %v1387
    %v1389 = vpop.f32.mrf.mxu0
    %v1390 = vadd.f32 %v1341, %v1389
    %1391 = vmatmul.bf16.gmra.mxu0 %v1169
    %v1392 = vpop.f32.mrf.mxu0
    %v1393 = vadd.f32 %v1344, %v1392
    %v1394 = vpop.f32.mrf.mxu0
    %v1395 = vadd.f32 %v1346, %v1394
    %1396 = vmatmul.bf16.gmra.mxu0 %v1171
    %v1397 = vpop.f32.mrf.mxu0
    %v1398 = vadd.f32 %v1349, %v1397
    %v1399 = vpop.f32.mrf.mxu0
    %v1400 = vadd.f32 %v1351, %v1399
    %1401 = vdwg.mxu0
    %v1402 = vmax.f32 %v1363, 0.0
    %v1403 = vmax.f32 %v1365, 0.0
    %v1404 = vmax.f32 %v1368, 0.0
    %v1405 = vmax.f32 %v1370, 0.0
    %v1406 = vmax.f32 %v1373, 0.0
    %v1407 = vmax.f32 %v1375, 0.0
    %v1408 = vmax.f32 %v1378, 0.0
    %v1409 = vmax.f32 %v1380, 0.0
    %v1410 = vmax.f32 %v1383, 0.0
    %v1411 = vmax.f32 %v1385, 0.0
    %v1412 = vmax.f32 %v1388, 0.0
    %v1413 = vmax.f32 %v1390, 0.0
    %v1414 = vmax.f32 %v1393, 0.0
    %v1415 = vmax.f32 %v1395, 0.0
    %v1416 = vmax.f32 %v1398, 0.0
    %v1417 = vmax.f32 %v1400, 0.0
    %v1418 = vpack.c.bf16 %v1403, %v1402
    %v1419 = vpack.c.bf16 %v1405, %v1404
    %v1420 = vpack.c.bf16 %v1407, %v1406
    %v1421 = vpack.c.bf16 %v1409, %v1408
    %v1422 = vpack.c.bf16 %v1411, %v1410
    %v1423 = vpack.c.bf16 %v1413, %v1412
    %v1424 = vpack.c.bf16 %v1415, %v1414
    %v1425 = vpack.c.bf16 %v1417, %v1416
    %v1426 = vld [vmem:[%s7] sm:$0xf]
    %v1427 = vld [vmem:[%s7 + $0x4] sm:$0xf]
    %v1428 = vld [vmem:[%s7 + $0x8] sm:$0xf]
    %v1429 = vld [vmem:[%s7 + $0xc] sm:$0xf]
    %v1430 = vld [vmem:[%s7 + $0x10] sm:$0xf]
    %v1431 = vld [vmem:[%s7 + $0x14] sm:$0xf]
    %v1432 = vld [vmem:[%s7 + $0x18] sm:$0xf]
    %v1433 = vld [vmem:[%s7 + $0x1c] sm:$0xf]
    %v1434 = vld [vmem:[%s7 + $0x20] sm:$0xf]
    %v1435 = vld [vmem:[%s7 + $0x24] sm:$0xf]
    %v1436 = vld [vmem:[%s7 + $0x28] sm:$0xf]
    %v1437 = vld [vmem:[%s7 + $0x2c] sm:$0xf]
    %v1438 = vld [vmem:[%s7 + $0x30] sm:$0xf]
    %v1439 = vld [vmem:[%s7 + $0x34] sm:$0xf]
    %v1440 = vld [vmem:[%s7 + $0x38] sm:$0xf]
    %v1441 = vld [vmem:[%s7 + $0x3c] sm:$0xf]
    %v1442 = vld [vmem:[%s8] sm:$0x1]
    %v1444 = vperm.slane %v1442, 0
    %v1462 = vunpack.c.l.b16 %v1426
    %v1463 = vunpack.c.l.b16 %v1427
    %v1464 = vunpack.c.l.b16 %v1428
    %v1465 = vunpack.c.l.b16 %v1429
    %v1466 = vunpack.c.l.b16 %v1430
    %v1467 = vunpack.c.l.b16 %v1431
    %v1468 = vunpack.c.l.b16 %v1432
    %v1469 = vunpack.c.l.b16 %v1433
    %v1470 = vunpack.c.l.b16 %v1434
    %v1471 = vunpack.c.l.b16 %v1435
    %v1472 = vunpack.c.l.b16 %v1436
    %v1473 = vunpack.c.l.b16 %v1437
    %v1474 = vunpack.c.l.b16 %v1438
    %v1475 = vunpack.c.l.b16 %v1439
    %v1476 = vunpack.c.l.b16 %v1440
    %v1477 = vunpack.c.l.b16 %v1441
    %v1478 = vpack.c.b16 %v1463, %v1462
    %v1479 = vpack.c.b16 %v1465, %v1464
    %v1480 = vpack.c.b16 %v1467, %v1466
    %v1481 = vpack.c.b16 %v1469, %v1468
    %v1482 = vpack.c.b16 %v1471, %v1470
    %v1483 = vpack.c.b16 %v1473, %v1472
    %v1484 = vpack.c.b16 %v1475, %v1474
    %v1485 = vpack.c.b16 %v1477, %v1476
    %1494 = vmatpush.bf16.msra.mxu0 %v1485
    %1495 = vmatpush.bf16.msra.mxu0 %v1484
    %1496 = vmatpush.bf16.msra.mxu0 %v1483
    %1497 = vmatpush.bf16.msra.mxu0 %v1482
    %1498 = vmatpush.bf16.msra.mxu0 %v1481
    %1499 = vmatpush.bf16.msra.mxu0 %v1480
    %1500 = vmatpush.bf16.msra.mxu0 %v1479
    %1501 = vmatpush.bf16.msra.mxu0 %v1478
    %1502 = vmatmul.bf16.gmra.mxu0 %v1418
    %v1503 = vpop.f32.mrf.mxu0
    %v1504 = vadd.f32 %v1444, %v1503
    %v1505 = vpop.f32.mrf.mxu0
    %v1506 = vadd.f32 %v1444, %v1505
    %1507 = vmatmul.bf16.gmra.mxu0 %v1419
    %v1508 = vpop.f32.mrf.mxu0
    %v1509 = vadd.f32 %v1444, %v1508
    %v1510 = vpop.f32.mrf.mxu0
    %v1511 = vadd.f32 %v1444, %v1510
    %1512 = vmatmul.bf16.gmra.mxu0 %v1420
    %v1513 = vpop.f32.mrf.mxu0
    %v1514 = vadd.f32 %v1444, %v1513
    %v1515 = vpop.f32.mrf.mxu0
    %v1516 = vadd.f32 %v1444, %v1515
    %1517 = vmatmul.bf16.gmra.mxu0 %v1421
    %v1518 = vpop.f32.mrf.mxu0
    %v1519 = vadd.f32 %v1444, %v1518
    %v1520 = vpop.f32.mrf.mxu0
    %v1521 = vadd.f32 %v1444, %v1520
    %1522 = vmatmul.bf16.gmra.mxu0 %v1422
    %v1523 = vpop.f32.mrf.mxu0
    %v1524 = vadd.f32 %v1444, %v1523
    %v1525 = vpop.f32.mrf.mxu0
    %v1526 = vadd.f32 %v1444, %v1525
    %1527 = vmatmul.bf16.gmra.mxu0 %v1423
    %v1528 = vpop.f32.mrf.mxu0
    %v1529 = vadd.f32 %v1444, %v1528
    %v1530 = vpop.f32.mrf.mxu0
    %v1531 = vadd.f32 %v1444, %v1530
    %1532 = vmatmul.bf16.gmra.mxu0 %v1424
    %v1533 = vpop.f32.mrf.mxu0
    %v1534 = vadd.f32 %v1444, %v1533
    %v1535 = vpop.f32.mrf.mxu0
    %v1536 = vadd.f32 %v1444, %v1535
    %1537 = vmatmul.bf16.gmra.mxu0 %v1425
    %v1538 = vpop.f32.mrf.mxu0
    %v1539 = vadd.f32 %v1444, %v1538
    %v1540 = vpop.f32.mrf.mxu0
    %v1541 = vadd.f32 %v1444, %v1540
    %1542 = vdwg.mxu0
    %v1543 = vmax.f32 %v1504, 0.0
    %v1544 = vmax.f32 %v1506, 0.0
    %v1545 = vmax.f32 %v1509, 0.0
    %v1546 = vmax.f32 %v1511, 0.0
    %v1547 = vmax.f32 %v1514, 0.0
    %v1548 = vmax.f32 %v1516, 0.0
    %v1549 = vmax.f32 %v1519, 0.0
    %v1550 = vmax.f32 %v1521, 0.0
    %v1551 = vmax.f32 %v1524, 0.0
    %v1552 = vmax.f32 %v1526, 0.0
    %v1553 = vmax.f32 %v1529, 0.0
    %v1554 = vmax.f32 %v1531, 0.0
    %v1555 = vmax.f32 %v1534, 0.0
    %v1556 = vmax.f32 %v1536, 0.0
    %v1557 = vmax.f32 %v1539, 0.0
    %v1558 = vmax.f32 %v1541, 0.0
    %v1559 = vpack.c.bf16 %v1544, %v1543
    %v1560 = vpack.c.bf16 %v1546, %v1545
    %v1561 = vpack.c.bf16 %v1548, %v1547
    %v1562 = vpack.c.bf16 %v1550, %v1549
    %v1563 = vpack.c.bf16 %v1552, %v1551
    %v1564 = vpack.c.bf16 %v1554, %v1553
    %v1565 = vpack.c.bf16 %v1556, %v1555
    %v1566 = vpack.c.bf16 %v1558, %v1557
    %v1567 = vld [vmem:[%s9] sm:$0xf]
    %1568 = vmatpush.bf16.xpose.msra.mxu0 %v1566
    %1569 = vmatpush.bf16.xpose.msra.mxu0 %v1565
    %1570 = vmatpush.bf16.xpose.msra.mxu0 %v1564
    %1571 = vmatpush.bf16.xpose.msra.mxu0 %v1563
    %1572 = vmatpush.bf16.xpose.msra.mxu0 %v1562
    %1573 = vmatpush.bf16.xpose.msra.mxu0 %v1561
    %1574 = vmatpush.bf16.xpose.msra.mxu0 %v1560
    %1575 = vmatpush.bf16.xpose.msra.mxu0 %v1559
    %1576 = vmatmul.bf16.gmra.mxu0 %v1567
    %v1577 = vpop.f32.mrf.mxu0
    %v1578 = vadd.f32 0.0, %v1577
    %v1579 = vpop.f32.mrf.mxu0
    %1580 = vdwg.mxu0
    %v1581 = vld [vmem:[%s10] sm:$0x1]
    %1583 = vset.pattern.permute.xlu0 0
    %1584 = vperm.xlu0 %1583, %v1581
    %v1585 = vpop.permute.xlu0 %1584
    %v1587 = vperm.slane %v1585, 0
    %v1588 = vadd.f32 %v1578, %v1587
    %v1589 = vtanh.pop %v1588
    %1590 = vst [vmem:[%s11] sm:$0x1] %v1589
    // Predicated region
    $region58: #{policy_net_forward.1} parent=1 // pred_check
      _
    $region59: #{policy_net_forward.1} parent=1 // pred_check_branch
      %1592 = sbr.rel (0) target = $region61
    $region60: #{policy_net_forward.1} parent=1 // pred_region
      _
    $region61: #{policy_net_forward.1} parent=1 // pred_fallthru
      _
    // Predicated region
    $region62: #{policy_net_forward.1} parent=1 // pred_check
      _
    $region63: #{policy_net_forward.1} parent=1 // pred_check_branch
      %1594 = sbr.rel (0) target = $region65
    $region64: #{policy_net_forward.1} parent=1 // pred_region
      _
    $region65: #{policy_net_forward.1} parent=1 // pred_fallthru
      _
    %1595 = vsyncpa [#allocation3], 1
    %1596 = vsyncpa [#allocation5], 1

</llo_original>
